<compile_context>
chip_gen: v6e
topology: v6e:2x2x1
jax: 0.10.0
libtpu: 0.0.40
codegen_flags: <defaults>
</compile_context>

<pallas_src>
import math

import jax
import jax.numpy as jnp
from jax.experimental import pallas as pl
from jax.experimental.pallas import tpu as pltpu


def _round_up(a, b):
    return (a + b - 1) // b * b


def _pick_tile_r(R):
    """Row-tile size: 256 for big problems, a power of two < round_up(R,8) otherwise."""
    r8 = _round_up(max(R, 8), 8)
    tr = 256
    while tr >= r8 and tr > 8:
        tr //= 2
    return max(tr, 8)


def make_resblock_params(num_features, key):
    C = num_features
    k1, k2, k3, k4 = jax.random.split(key, 4)
    return dict(
        w1=jax.random.normal(k1, (C, C, 3, 3), jnp.float32) * 0.2,  # OIHW
        b1=jax.random.normal(k2, (C,), jnp.float32) * 0.1,
        g1=jnp.ones((C,), jnp.float32),
        be1=jnp.zeros((C,), jnp.float32),
        alpha=jnp.full((1, 1), 0.25, jnp.float32),  # nn.PReLU() default init
        w2=jax.random.normal(k3, (C, C, 3, 3), jnp.float32) * 0.2,
        b2=jax.random.normal(k4, (C,), jnp.float32) * 0.1,
        g2=jnp.ones((C,), jnp.float32),
        be2=jnp.zeros((C,), jnp.float32),
    )


def _band_conv_weights(w_oihw, W, Wg, C, L):
    """OIHW 3x3 kernel -> (3, L, L) banded matrices.

    mats[kh][(w+dw)*C + ci, w*C + co] = w_oihw[co, ci, kh, dw+1]
    for interior output columns w in [1, W]; zero elsewhere (pad lanes included),
    so conv output is automatically zero at w-padding lanes.
    """
    cols = jnp.arange(1, W + 1)
    mats = []
    for kh in range(3):
        m = jnp.zeros((L, L), jnp.float32)
        for dw in (-1, 0, 1):
            p = jnp.zeros((Wg, Wg), jnp.float32).at[cols + dw, cols].set(1.0)
            m = m + jnp.kron(p, w_oihw[:, :, kh, dw + 1].T.astype(jnp.float32))
        mats.append(m)
    return jnp.stack(mats)


def _conv_pass(xin, wb, brow, scale_row, shift_row, alpha_row, *,
               H, Hp, R, R_pad, L, tile_r, vmem_limit):
    """Elementwise pre-op (BN-apply + PReLU, or identity) followed by a 3x3 conv.

    Returns (y, stats) where y is the masked conv output in the packed layout and
    stats[8*i + 0/1, :] are this tile's per-lane sum / sum-of-squares of y.
    """
    num_tiles = R_pad // tile_r
    tr8 = tile_r // 8
    nblk8 = R_pad // 8
    Hp_f, H_f, R_f = float(Hp), float(H), float(R)

    def kernel(scale_ref, shift_ref, alpha_ref, wb_ref, brow_ref,
               xtop_ref, xcur_ref, xbot_ref, y_ref, stats_ref):
        row0 = pl.program_id(0) * tile_r
        scale = scale_ref[...]
        shift = shift_ref[...]
        alpha = alpha_ref[...]

        def rowmask(start, nrows):
            # valid <=> row < R and 1 <= (row mod Hp) <= H  (i.e. not an h-pad row)
            rf = (start + jax.lax.broadcasted_iota(jnp.int32, (nrows, 1), 0)
                  ).astype(jnp.float32)
            h = rf - jnp.floor(rf / Hp_f) * Hp_f
            ok = (h >= 1.0) & (h <= H_f) & (rf < R_f)
            return jnp.where(ok, 1.0, 0.0)

        def preact(x, m):
            # BN-apply + PReLU (identity in pass 1), zeroed at padding rows/lanes.
            z = x * scale + shift
            z = jnp.maximum(z, 0.0) + alpha * jnp.minimum(z, 0.0)
            return z * m

        m_cur = rowmask(row0, tile_r)
        cur = preact(xcur_ref[...], m_cur)
        top = preact(xtop_ref[...], rowmask(jnp.maximum(row0 - 8, 0), 8))
        bot = preact(xbot_ref[...], rowmask(jnp.minimum(row0 + tile_r, R_pad - 8), 8))

        # rows shifted by dh = -1 / +1; the out-of-tile rows come from the halo blocks
        x_m1 = jnp.concatenate([top[7:8, :], cur[:tile_r - 1, :]], axis=0)
        x_p1 = jnp.concatenate([cur[1:, :], bot[0:1, :]], axis=0)

        y = jnp.dot(x_m1, wb_ref[0], preferred_element_type=jnp.float32)
        y = y + jnp.dot(cur, wb_ref[1], preferred_element_type=jnp.float32)
        y = y + jnp.dot(x_p1, wb_ref[2], preferred_element_type=jnp.float32)
        y = (y + brow_ref[...]) * m_cur        # zero at h-pad rows (and pad lanes)

        y_ref[...] = y
        # single-pass partial BN statistics for this tile
        stats_ref[...] = jnp.concatenate(
            [jnp.sum(y, axis=0, keepdims=True),
             jnp.sum(y * y, axis=0, keepdims=True),
             jnp.zeros((6, L), jnp.float32)], axis=0)

    const2 = lambda i: (0, 0)
    y, stats = pl.pallas_call(
        kernel,
        grid=(num_tiles,),
        in_specs=[
            pl.BlockSpec((1, L), const2),                   # scale_row
            pl.BlockSpec((1, L), const2),                   # shift_row
            pl.BlockSpec((1, L), const2),                   # alpha_row
            pl.BlockSpec((3, L, L), lambda i: (0, 0, 0)),   # banded conv weights
            pl.BlockSpec((1, L), const2),                   # bias row
            pl.BlockSpec((8, L), lambda i: (jnp.maximum(i * tr8 - 1, 0), 0)),      # top halo
            pl.BlockSpec((tile_r, L), lambda i: (i, 0)),                            # current tile
            pl.BlockSpec((8, L), lambda i: (jnp.minimum((i + 1) * tr8, nblk8 - 1), 0)),  # bottom halo
        ],
        out_specs=[
            pl.BlockSpec((tile_r, L), lambda i: (i, 0)),
            pl.BlockSpec((8, L), lambda i: (i, 0)),
        ],
        out_shape=[
            jax.ShapeDtypeStruct((R_pad, L), jnp.float32),
            jax.ShapeDtypeStruct((num_tiles * 8, L), jnp.float32),
        ],
        compiler_params=pltpu.CompilerParams(
            dimension_semantics=("parallel",),      # independent tiles -> megacore-friendly
            vmem_limit_bytes=vmem_limit),
    )(scale_row, shift_row, alpha_row, wb, brow, xin, xin, xin)
    return y, stats


def _bn_residual_pass(xp, y2, scale_row, shift_row, *, R_pad, L, tile_r, vmem_limit):
    num_tiles = R_pad // tile_r

    def kernel(scale_ref, shift_ref, x_ref, y_ref, o_ref):
        o_ref[...] = x_ref[...] + y_ref[...] * scale_ref[...] + shift_ref[...]

    blk = pl.BlockSpec((tile_r, L), lambda i: (i, 0))
    return pl.pallas_call(
        kernel,
        grid=(num_tiles,),
        in_specs=[pl.BlockSpec((1, L), lambda i: (0, 0)),
                  pl.BlockSpec((1, L), lambda i: (0, 0)),
                  blk, blk],
        out_specs=blk,
        out_shape=jax.ShapeDtypeStruct((R_pad, L), jnp.float32),
        compiler_params=pltpu.CompilerParams(
            dimension_semantics=("parallel",),
            vmem_limit_bytes=vmem_limit),
    )(scale_row, shift_row, xp, y2)


def _bn_scale_shift(stats, gamma, beta, Wg, C, count, eps=1e-5):
    """Reduce per-tile (sum, sumsq) partials -> per-channel BN scale/shift (tiny arrays)."""
    s = jnp.sum(stats.reshape(-1, 8, stats.shape[-1]), axis=0)   # (8, L)
    ssum = jnp.sum(s[0].reshape(Wg, C), axis=0)                  # (C,)
    ssq = jnp.sum(s[1].reshape(Wg, C), axis=0)
    mean = ssum / count
    var = jnp.maximum(ssq / count - mean * mean, 0.0)            # biased (training-mode)
    scale = gamma * jax.lax.rsqrt(var + eps)
    shift = beta - mean * scale
    return scale, shift


def resblock_pallas(x_nchw, params, tile_r=None):
    N, C, H, W = x_nchw.shape
    Hp, Wp = H + 2, W + 2
    step = 128 // math.gcd(C, 128)
    Wg = _round_up(Wp, step)          # lane groups: Wg*C is a multiple of 128
    L = Wg * C
    R = N * Hp
    if tile_r is None:
        tile_r = _pick_tile_r(R)
    tile_r = _round_up(tile_r, 8)
    R_pad = _round_up(R, tile_r)
    count = float(N * H * W)
    f32 = jnp.float32

    # ---- pack NCHW -> (R_pad, L) lane-dense zero-padded layout (single pad op) ----
    x_nhwc = jnp.transpose(x_nchw, (0, 2, 3, 1)).astype(f32)
    xp = jnp.pad(x_nhwc, ((0, 0), (1, 1), (1, Wg - W - 1), (0, 0))).reshape(R, L)
    if R_pad > R:
        xp = jnp.pad(xp, ((0, R_pad - R), (0, 0)))

    # ---- per-lane constant rows (zero at w-padding lanes) ----
    wvalid = ((jnp.arange(Wg) >= 1) & (jnp.arange(Wg) <= W)).astype(f32)
    lane_valid = jnp.repeat(wvalid, C)                           # (L,)

    def lane_row(per_channel):                                   # (C,) -> (1, L)
        return (lane_valid * jnp.tile(per_channel.astype(f32), Wg)).reshape(1, L)

    wb1 = _band_conv_weights(params["w1"], W, Wg, C, L)
    wb2 = _band_conv_weights(params["w2"], W, Wg, C, L)
    b1row = lane_row(params["b1"])
    b2row = lane_row(params["b2"])

    ones_c = jnp.ones((C,), f32)
    zeros_row = jnp.zeros((1, L), f32)
    ones_row = lane_row(ones_c)
    alpha_row = lane_row(params["alpha"].reshape(()) * ones_c)

    # explicit VMEM budget: weights + double-buffered tiles/halos/outputs + headroom
    vmem_limit = int(min(max(4 * (3 * L * L + 16 * tile_r * L + 64 * L) + (4 << 20),
                             16 << 20), 100 << 20))
    kw = dict(H=H, Hp=Hp, R=R, R_pad=R_pad, L=L, tile_r=tile_r, vmem_limit=vmem_limit)

    # pass 1: conv1 (+ partial BN1 stats); identity pre-op (scale=1, shift=0, alpha=1)
    y1, st1 = _conv_pass(xp, wb1, b1row, ones_row, zeros_row, ones_row, **kw)
    sc1, sh1 = _bn_scale_shift(st1, params["g1"], params["be1"], Wg, C, count)

    # pass 2: BN1-apply + PReLU + conv2 (+ partial BN2 stats)
    y2, st2 = _conv_pass(y1, wb2, b2row, lane_row(sc1), lane_row(sh1), alpha_row, **kw)
    sc2, sh2 = _bn_scale_shift(st2, params["g2"], params["be2"], Wg, C, count)

    # pass 3: BN2-apply + residual add
    out_flat = _bn_residual_pass(xp, y2, lane_row(sc2), lane_row(sh2),
                                 R_pad=R_pad, L=L, tile_r=tile_r,
                                 vmem_limit=vmem_limit)

    out = out_flat[:R].reshape(N, Hp, Wg, C)[:, 1:H + 1, 1:W + 1, :]
    return jnp.transpose(out, (0, 3, 1, 2))                      # back to NCHW


def resblock_reference(x, params):
    # pure-JAX/XLA reference of the PyTorch module (training-mode BN)
    def conv(h, w, b):
        y = jax.lax.conv_general_dilated(
            h, w, (1, 1), "SAME",
            dimension_numbers=("NCHW", "OIHW", "NCHW"))
        return y + b.reshape(1, -1, 1, 1)

    def bn(y, g, be):
        mean = jnp.mean(y, axis=(0, 2, 3), keepdims=True)
        var = jnp.mean((y - mean) ** 2, axis=(0, 2, 3), keepdims=True)
        return ((y - mean) * jax.lax.rsqrt(var + 1e-5)
                * g.reshape(1, -1, 1, 1) + be.reshape(1, -1, 1, 1))

    h = bn(conv(x, params["w1"], params["b1"]), params["g1"], params["be1"])
    a = params["alpha"].reshape(())
    h = jnp.where(h >= 0, h, a * h)
    h = bn(conv(h, params["w2"], params["b2"]), params["g2"], params["be2"])
    return x + h


if __name__ == "__main__":
    key = jax.random.PRNGKey(0)
    kx, kp = jax.random.split(key)
    N, C, H, W = 2, 4, 16, 16
    x = jax.random.normal(kx, (N, C, H, W), jnp.float32)
    params = make_resblock_params(C, kp)

    out = jax.block_until_ready(resblock_pallas(x, params))
    ref = resblock_reference(x, params)
    err = float(jnp.max(jnp.abs(out - ref)))
    assert out.shape == (N, C, H, W), out.shape
    assert err < 5e-2, f"max abs err {err}"
    print("KERNEL_OK")
</pallas_src>

<mosaic_0001>
module attributes {stable_mosaic.version = 11 : i64} {
  func.func @kernel(%arg0: i32, %arg1: memref<1x128xf32, #tpu.memory_space<vmem>>, %arg2: memref<1x128xf32, #tpu.memory_space<vmem>>, %arg3: memref<1x128xf32, #tpu.memory_space<vmem>>, %arg4: memref<3x128x128xf32, #tpu.memory_space<vmem>>, %arg5: memref<1x128xf32, #tpu.memory_space<vmem>>, %arg6: memref<8x128xf32, #tpu.memory_space<vmem>>, %arg7: memref<32x128xf32, #tpu.memory_space<vmem>>, %arg8: memref<8x128xf32, #tpu.memory_space<vmem>>, %arg9: memref<32x128xf32, #tpu.memory_space<vmem>>, %arg10: memref<8x128xf32, #tpu.memory_space<vmem>>) attributes {dimension_semantics = [#tpu.dimension_semantics<parallel>], iteration_bounds = array<i64: 2>, scalar_prefetch = 0 : i64, scratch_operands = 0 : i64, tpu.core_type = #tpu.core_type<tc>, window_params = [{pipeline_mode = #tpu.pipeline_mode<synchronous>, transform_indices = @transform_0, window_bounds = array<i64: 1, 128>}, {pipeline_mode = #tpu.pipeline_mode<synchronous>, transform_indices = @transform_1, window_bounds = array<i64: 1, 128>}, {pipeline_mode = #tpu.pipeline_mode<synchronous>, transform_indices = @transform_2, window_bounds = array<i64: 1, 128>}, {pipeline_mode = #tpu.pipeline_mode<synchronous>, transform_indices = @transform_3, window_bounds = array<i64: 3, 128, 128>}, {pipeline_mode = #tpu.pipeline_mode<synchronous>, transform_indices = @transform_4, window_bounds = array<i64: 1, 128>}, {transform_indices = @transform_5, window_bounds = array<i64: 8, 128>}, {transform_indices = @transform_6, window_bounds = array<i64: 32, 128>}, {transform_indices = @transform_7, window_bounds = array<i64: 8, 128>}, {transform_indices = @transform_8, window_bounds = array<i64: 32, 128>}, {transform_indices = @transform_9, window_bounds = array<i64: 8, 128>}]} {
    %c32_i32 = arith.constant 32 : i32
    %0 = arith.muli %arg0, %c32_i32 : i32
    %c0 = arith.constant 0 : index
    %c0_0 = arith.constant 0 : index
    %1 = vector.load %arg1[%c0, %c0_0] : memref<1x128xf32, #tpu.memory_space<vmem>>, vector<1x128xf32>
    %c0_1 = arith.constant 0 : index
    %c0_2 = arith.constant 0 : index
    %2 = vector.load %arg2[%c0_1, %c0_2] : memref<1x128xf32, #tpu.memory_space<vmem>>, vector<1x128xf32>
    %c0_3 = arith.constant 0 : index
    %c0_4 = arith.constant 0 : index
    %3 = vector.load %arg3[%c0_3, %c0_4] : memref<1x128xf32, #tpu.memory_space<vmem>>, vector<1x128xf32>
    %4 = tpu.iota {dimensions = array<i32: 0>} : vector<32x1xi32>
    %5 = vector.broadcast %0 : i32 to vector<32x1xi32>
    %6 = arith.addi %5, %4 : vector<32x1xi32>
    %7 = arith.sitofp %6 : vector<32x1xi32> to vector<32x1xf32>
    %cst = arith.constant 1.800000e+01 : f32
    %8 = vector.broadcast %cst : f32 to vector<32x1xf32>
    %9 = arith.divf %7, %8 : vector<32x1xf32>
    %10 = math.floor %9 : vector<32x1xf32>
    %cst_5 = arith.constant 1.800000e+01 : f32
    %11 = vector.broadcast %cst_5 : f32 to vector<32x1xf32>
    %12 = arith.mulf %10, %11 : vector<32x1xf32>
    %13 = arith.subf %7, %12 : vector<32x1xf32>
    %cst_6 = arith.constant 1.000000e+00 : f32
    %14 = vector.broadcast %cst_6 : f32 to vector<32x1xf32>
    %15 = arith.cmpf oge, %13, %14 : vector<32x1xf32>
    %cst_7 = arith.constant 1.600000e+01 : f32
    %16 = vector.broadcast %cst_7 : f32 to vector<32x1xf32>
    %17 = arith.cmpf ole, %13, %16 : vector<32x1xf32>
    %18 = arith.andi %15, %17 : vector<32x1xi1>
    %cst_8 = arith.constant 3.600000e+01 : f32
    %19 = vector.broadcast %cst_8 : f32 to vector<32x1xf32>
    %20 = arith.cmpf olt, %7, %19 : vector<32x1xf32>
    %21 = arith.andi %18, %20 : vector<32x1xi1>
    %cst_9 = arith.constant 1.000000e+00 : f32
    %cst_10 = arith.constant 0.000000e+00 : f32
    %22 = vector.broadcast %cst_9 : f32 to vector<32x1xf32>
    %23 = vector.broadcast %cst_10 : f32 to vector<32x1xf32>
    %24 = arith.select %21, %22, %23 : vector<32x1xi1>, vector<32x1xf32>
    %c0_11 = arith.constant 0 : index
    %c0_12 = arith.constant 0 : index
    %25 = vector.load %arg7[%c0_11, %c0_12] : memref<32x128xf32, #tpu.memory_space<vmem>>, vector<32x128xf32>
    %26 = vector.broadcast %1 : vector<1x128xf32> to vector<32x128xf32>
    %27 = arith.mulf %25, %26 : vector<32x128xf32>
    %28 = vector.broadcast %2 : vector<1x128xf32> to vector<32x128xf32>
    %29 = arith.addf %27, %28 : vector<32x128xf32>
    %cst_13 = arith.constant 0.000000e+00 : f32
    %30 = vector.broadcast %cst_13 : f32 to vector<32x128xf32>
    %31 = arith.maximumf %29, %30 : vector<32x128xf32>
    %cst_14 = arith.constant 0.000000e+00 : f32
    %32 = vector.broadcast %cst_14 : f32 to vector<32x128xf32>
    %33 = arith.minimumf %29, %32 : vector<32x128xf32>
    %34 = vector.broadcast %3 : vector<1x128xf32> to vector<32x128xf32>
    %35 = arith.mulf %34, %33 : vector<32x128xf32>
    %36 = arith.addf %31, %35 : vector<32x128xf32>
    %37 = vector.broadcast %24 : vector<32x1xf32> to vector<32x128xf32>
    %38 = arith.mulf %36, %37 : vector<32x128xf32>
    %c0_15 = arith.constant 0 : index
    %c0_16 = arith.constant 0 : index
    %39 = vector.load %arg6[%c0_15, %c0_16] : memref<8x128xf32, #tpu.memory_space<vmem>>, vector<8x128xf32>
    %c8_i32 = arith.constant 8 : i32
    %40 = arith.subi %0, %c8_i32 : i32
    %c0_i32 = arith.constant 0 : i32
    %41 = arith.maxsi %40, %c0_i32 : i32
    %42 = tpu.iota {dimensions = array<i32: 0>} : vector<8x1xi32>
    %43 = vector.broadcast %41 : i32 to vector<8x1xi32>
    %44 = arith.addi %43, %42 : vector<8x1xi32>
    %45 = arith.sitofp %44 : vector<8x1xi32> to vector<8x1xf32>
    %cst_17 = arith.constant 1.800000e+01 : f32
    %46 = vector.broadcast %cst_17 : f32 to vector<8x1xf32>
    %47 = arith.divf %45, %46 : vector<8x1xf32>
    %48 = math.floor %47 : vector<8x1xf32>
    %cst_18 = arith.constant 1.800000e+01 : f32
    %49 = vector.broadcast %cst_18 : f32 to vector<8x1xf32>
    %50 = arith.mulf %48, %49 : vector<8x1xf32>
    %51 = arith.subf %45, %50 : vector<8x1xf32>
    %cst_19 = arith.constant 1.000000e+00 : f32
    %52 = vector.broadcast %cst_19 : f32 to vector<8x1xf32>
    %53 = arith.cmpf oge, %51, %52 : vector<8x1xf32>
    %cst_20 = arith.constant 1.600000e+01 : f32
    %54 = vector.broadcast %cst_20 : f32 to vector<8x1xf32>
    %55 = arith.cmpf ole, %51, %54 : vector<8x1xf32>
    %56 = arith.andi %53, %55 : vector<8x1xi1>
    %cst_21 = arith.constant 3.600000e+01 : f32
    %57 = vector.broadcast %cst_21 : f32 to vector<8x1xf32>
    %58 = arith.cmpf olt, %45, %57 : vector<8x1xf32>
    %59 = arith.andi %56, %58 : vector<8x1xi1>
    %cst_22 = arith.constant 1.000000e+00 : f32
    %cst_23 = arith.constant 0.000000e+00 : f32
    %60 = vector.broadcast %cst_22 : f32 to vector<8x1xf32>
    %61 = vector.broadcast %cst_23 : f32 to vector<8x1xf32>
    %62 = arith.select %59, %60, %61 : vector<8x1xi1>, vector<8x1xf32>
    %63 = vector.broadcast %1 : vector<1x128xf32> to vector<8x128xf32>
    %64 = arith.mulf %39, %63 : vector<8x128xf32>
    %65 = vector.broadcast %2 : vector<1x128xf32> to vector<8x128xf32>
    %66 = arith.addf %64, %65 : vector<8x128xf32>
    %cst_24 = arith.constant 0.000000e+00 : f32
    %67 = vector.broadcast %cst_24 : f32 to vector<8x128xf32>
    %68 = arith.maximumf %66, %67 : vector<8x128xf32>
    %cst_25 = arith.constant 0.000000e+00 : f32
    %69 = vector.broadcast %cst_25 : f32 to vector<8x128xf32>
    %70 = arith.minimumf %66, %69 : vector<8x128xf32>
    %71 = vector.broadcast %3 : vector<1x128xf32> to vector<8x128xf32>
    %72 = arith.mulf %71, %70 : vector<8x128xf32>
    %73 = arith.addf %68, %72 : vector<8x128xf32>
    %74 = vector.broadcast %62 : vector<8x1xf32> to vector<8x128xf32>
    %75 = arith.mulf %73, %74 : vector<8x128xf32>
    %c0_26 = arith.constant 0 : index
    %c0_27 = arith.constant 0 : index
    %76 = vector.load %arg8[%c0_26, %c0_27] : memref<8x128xf32, #tpu.memory_space<vmem>>, vector<8x128xf32>
    %c32_i32_28 = arith.constant 32 : i32
    %77 = arith.addi %0, %c32_i32_28 : i32
    %c56_i32 = arith.constant 56 : i32
    %78 = arith.minsi %77, %c56_i32 : i32
    %79 = tpu.iota {dimensions = array<i32: 0>} : vector<8x1xi32>
    %80 = vector.broadcast %78 : i32 to vector<8x1xi32>
    %81 = arith.addi %80, %79 : vector<8x1xi32>
    %82 = arith.sitofp %81 : vector<8x1xi32> to vector<8x1xf32>
    %cst_29 = arith.constant 1.800000e+01 : f32
    %83 = vector.broadcast %cst_29 : f32 to vector<8x1xf32>
    %84 = arith.divf %82, %83 : vector<8x1xf32>
    %85 = math.floor %84 : vector<8x1xf32>
    %cst_30 = arith.constant 1.800000e+01 : f32
    %86 = vector.broadcast %cst_30 : f32 to vector<8x1xf32>
    %87 = arith.mulf %85, %86 : vector<8x1xf32>
    %88 = arith.subf %82, %87 : vector<8x1xf32>
    %cst_31 = arith.constant 1.000000e+00 : f32
    %89 = vector.broadcast %cst_31 : f32 to vector<8x1xf32>
    %90 = arith.cmpf oge, %88, %89 : vector<8x1xf32>
    %cst_32 = arith.constant 1.600000e+01 : f32
    %91 = vector.broadcast %cst_32 : f32 to vector<8x1xf32>
    %92 = arith.cmpf ole, %88, %91 : vector<8x1xf32>
    %93 = arith.andi %90, %92 : vector<8x1xi1>
    %cst_33 = arith.constant 3.600000e+01 : f32
    %94 = vector.broadcast %cst_33 : f32 to vector<8x1xf32>
    %95 = arith.cmpf olt, %82, %94 : vector<8x1xf32>
    %96 = arith.andi %93, %95 : vector<8x1xi1>
    %cst_34 = arith.constant 1.000000e+00 : f32
    %cst_35 = arith.constant 0.000000e+00 : f32
    %97 = vector.broadcast %cst_34 : f32 to vector<8x1xf32>
    %98 = vector.broadcast %cst_35 : f32 to vector<8x1xf32>
    %99 = arith.select %96, %97, %98 : vector<8x1xi1>, vector<8x1xf32>
    %100 = vector.broadcast %1 : vector<1x128xf32> to vector<8x128xf32>
    %101 = arith.mulf %76, %100 : vector<8x128xf32>
    %102 = vector.broadcast %2 : vector<1x128xf32> to vector<8x128xf32>
    %103 = arith.addf %101, %102 : vector<8x128xf32>
    %cst_36 = arith.constant 0.000000e+00 : f32
    %104 = vector.broadcast %cst_36 : f32 to vector<8x128xf32>
    %105 = arith.maximumf %103, %104 : vector<8x128xf32>
    %cst_37 = arith.constant 0.000000e+00 : f32
    %106 = vector.broadcast %cst_37 : f32 to vector<8x128xf32>
    %107 = arith.minimumf %103, %106 : vector<8x128xf32>
    %108 = vector.broadcast %3 : vector<1x128xf32> to vector<8x128xf32>
    %109 = arith.mulf %108, %107 : vector<8x128xf32>
    %110 = arith.addf %105, %109 : vector<8x128xf32>
    %111 = vector.broadcast %99 : vector<8x1xf32> to vector<8x128xf32>
    %112 = arith.mulf %110, %111 : vector<8x128xf32>
    %113 = vector.extract_strided_slice %75 {offsets = [7, 0], sizes = [1, 128], strides = [1, 1]} : vector<8x128xf32> to vector<1x128xf32>
    %114 = vector.extract_strided_slice %38 {offsets = [0, 0], sizes = [31, 128], strides = [1, 1]} : vector<32x128xf32> to vector<31x128xf32>
    %115 = tpu.concatenate %113, %114 in 0 : vector<1x128xf32>, vector<31x128xf32> -> vector<32x128xf32>
    %116 = vector.extract_strided_slice %38 {offsets = [1, 0], sizes = [31, 128], strides = [1, 1]} : vector<32x128xf32> to vector<31x128xf32>
    %117 = vector.extract_strided_slice %112 {offsets = [0, 0], sizes = [1, 128], strides = [1, 1]} : vector<8x128xf32> to vector<1x128xf32>
    %118 = tpu.concatenate %116, %117 in 0 : vector<31x128xf32>, vector<1x128xf32> -> vector<32x128xf32>
    %c0_38 = arith.constant 0 : index
    %c0_39 = arith.constant 0 : index
    %c0_40 = arith.constant 0 : index
    %119 = vector.load %arg4[%c0_38, %c0_39, %c0_40] : memref<3x128x128xf32, #tpu.memory_space<vmem>>, vector<1x128x128xf32>
    %120 = vector.shape_cast %119 : vector<1x128x128xf32> to vector<128x128xf32>
    %cst_41 = arith.constant dense<0.000000e+00> : vector<32x128xf32>
    %121 = tpu.matmul %115, %120, %cst_41 {dimension_numbers = #tpu.dot_dimension_numbers<[1], [0], [0], [1], [0, 0, 1, 1], [], []>} : vector<32x128xf32>, vector<128x128xf32>, vector<32x128xf32> -> vector<32x128xf32>
    %c1 = arith.constant 1 : index
    %c0_42 = arith.constant 0 : index
    %c0_43 = arith.constant 0 : index
    %122 = vector.load %arg4[%c1, %c0_42, %c0_43] : memref<3x128x128xf32, #tpu.memory_space<vmem>>, vector<1x128x128xf32>
    %123 = vector.shape_cast %122 : vector<1x128x128xf32> to vector<128x128xf32>
    %cst_44 = arith.constant dense<0.000000e+00> : vector<32x128xf32>
    %124 = tpu.matmul %38, %123, %cst_44 {dimension_numbers = #tpu.dot_dimension_numbers<[1], [0], [0], [1], [0, 0, 1, 1], [], []>} : vector<32x128xf32>, vector<128x128xf32>, vector<32x128xf32> -> vector<32x128xf32>
    %125 = arith.addf %121, %124 : vector<32x128xf32>
    %c2 = arith.constant 2 : index
    %c0_45 = arith.constant 0 : index
    %c0_46 = arith.constant 0 : index
    %126 = vector.load %arg4[%c2, %c0_45, %c0_46] : memref<3x128x128xf32, #tpu.memory_space<vmem>>, vector<1x128x128xf32>
    %127 = vector.shape_cast %126 : vector<1x128x128xf32> to vector<128x128xf32>
    %cst_47 = arith.constant dense<0.000000e+00> : vector<32x128xf32>
    %128 = tpu.matmul %118, %127, %cst_47 {dimension_numbers = #tpu.dot_dimension_numbers<[1], [0], [0], [1], [0, 0, 1, 1], [], []>} : vector<32x128xf32>, vector<128x128xf32>, vector<32x128xf32> -> vector<32x128xf32>
    %129 = arith.addf %125, %128 : vector<32x128xf32>
    %c0_48 = arith.constant 0 : index
    %c0_49 = arith.constant 0 : index
    %130 = vector.load %arg5[%c0_48, %c0_49] : memref<1x128xf32, #tpu.memory_space<vmem>>, vector<1x128xf32>
    %131 = vector.broadcast %130 : vector<1x128xf32> to vector<32x128xf32>
    %132 = arith.addf %129, %131 : vector<32x128xf32>
    %133 = vector.broadcast %24 : vector<32x1xf32> to vector<32x128xf32>
    %134 = arith.mulf %132, %133 : vector<32x128xf32>
    %c0_50 = arith.constant 0 : index
    %c0_51 = arith.constant 0 : index
    %135 = vector.load %arg9[%c0_50, %c0_51] : memref<32x128xf32, #tpu.memory_space<vmem>>, vector<32x128xf32>
    tpu.vector_store %arg9[%c0_50, %c0_51], %134 {strides = array<i32>} : memref<32x128xf32, #tpu.memory_space<vmem>>, vector<32x128xf32>,
    %cst_52 = arith.constant dense<0.000000e+00> : vector<128xf32>
    %136 = vector.multi_reduction <add>, %134, %cst_52 [0] : vector<32x128xf32> to vector<128xf32>
    %137 = vector.shape_cast %136 : vector<128xf32> to vector<1x128xf32>
    %138 = arith.mulf %134, %134 : vector<32x128xf32>
    %cst_53 = arith.constant dense<0.000000e+00> : vector<128xf32>
    %139 = vector.multi_reduction <add>, %138, %cst_53 [0] : vector<32x128xf32> to vector<128xf32>
    %140 = vector.shape_cast %139 : vector<128xf32> to vector<1x128xf32>
    %cst_54 = arith.constant 0.000000e+00 : f32
    %141 = vector.broadcast %cst_54 : f32 to vector<6x128xf32>
    %142 = tpu.concatenate %137, %140, %141 in 0 : vector<1x128xf32>, vector<1x128xf32>, vector<6x128xf32> -> vector<8x128xf32>
    %c0_55 = arith.constant 0 : index
    %c0_56 = arith.constant 0 : index
    %143 = vector.load %arg10[%c0_55, %c0_56] : memref<8x128xf32, #tpu.memory_space<vmem>>, vector<8x128xf32>
    tpu.vector_store %arg10[%c0_55, %c0_56], %142 {strides = array<i32>} : memref<8x128xf32, #tpu.memory_space<vmem>>, vector<8x128xf32>,
    return
  }
  func.func @transform_0(%arg0: i32) -> (i32, i32) {
    %c0_i32 = arith.constant 0 : i32
    %c0_i32_0 = arith.constant 0 : i32
    %c0_i32_1 = arith.constant 0 : i32
    return %c0_i32, %c0_i32_0 : i32, i32
  }
  func.func @transform_1(%arg0: i32) -> (i32, i32) {
    %c0_i32 = arith.constant 0 : i32
    %c0_i32_0 = arith.constant 0 : i32
    %c0_i32_1 = arith.constant 0 : i32
    return %c0_i32, %c0_i32_0 : i32, i32
  }
  func.func @transform_2(%arg0: i32) -> (i32, i32) {
    %c0_i32 = arith.constant 0 : i32
    %c0_i32_0 = arith.constant 0 : i32
    %c0_i32_1 = arith.constant 0 : i32
    return %c0_i32, %c0_i32_0 : i32, i32
  }
  func.func @transform_3(%arg0: i32) -> (i32, i32, i32) {
    %c0_i32 = arith.constant 0 : i32
    %c0_i32_0 = arith.constant 0 : i32
    %c0_i32_1 = arith.constant 0 : i32
    %c0_i32_2 = arith.constant 0 : i32
    return %c0_i32, %c0_i32_0, %c0_i32_1 : i32, i32, i32
  }
  func.func @transform_4(%arg0: i32) -> (i32, i32) {
    %c0_i32 = arith.constant 0 : i32
    %c0_i32_0 = arith.constant 0 : i32
    %c0_i32_1 = arith.constant 0 : i32
    return %c0_i32, %c0_i32_0 : i32, i32
  }
  func.func @transform_5(%arg0: i32) -> (i32, i32) {
    %c4_i32 = arith.constant 4 : i32
    %0 = arith.muli %arg0, %c4_i32 : i32
    %c1_i32 = arith.constant 1 : i32
    %1 = arith.subi %0, %c1_i32 : i32
    %c0_i32 = arith.constant 0 : i32
    %2 = arith.maxsi %1, %c0_i32 : i32
    %c0_i32_0 = arith.constant 0 : i32
    %c0_i32_1 = arith.constant 0 : i32
    return %2, %c0_i32_0 : i32, i32
  }
  func.func @transform_6(%arg0: i32) -> (i32, i32) {
    %c0_i32 = arith.constant 0 : i32
    %c0_i32_0 = arith.constant 0 : i32
    return %arg0, %c0_i32 : i32, i32
  }
  func.func @transform_7(%arg0: i32) -> (i32, i32) {
    %c1_i32 = arith.constant 1 : i32
    %0 = arith.addi %arg0, %c1_i32 : i32
    %c4_i32 = arith.constant 4 : i32
    %1 = arith.muli %0, %c4_i32 : i32
    %c7_i32 = arith.constant 7 : i32
    %2 = arith.minsi %1, %c7_i32 : i32
    %c0_i32 = arith.constant 0 : i32
    %c0_i32_0 = arith.constant 0 : i32
    return %2, %c0_i32 : i32, i32
  }
  func.func @transform_8(%arg0: i32) -> (i32, i32) {
    %c0_i32 = arith.constant 0 : i32
    %c0_i32_0 = arith.constant 0 : i32
    return %arg0, %c0_i32 : i32, i32
  }
  func.func @transform_9(%arg0: i32) -> (i32, i32) {
    %c0_i32 = arith.constant 0 : i32
    %c0_i32_0 = arith.constant 0 : i32
    return %arg0, %c0_i32 : i32, i32
  }
}

</mosaic_0001>

<llo_original>
// kernel: tpu_custom_call.1
$region0: #{tpu_custom_call.1}
  #allocation0 [shape = 'u32[]', space=smem, size = 0x4, offset = 0x4, fixed_abs, tag = 'smem constant byte address 0x4 - core index']
  #allocation1 [shape = 'u32[144,128]{1,0:T(1,128)}', space=vmem, size = 0x12000, scoped, tag = 'internal scratch']
  %s0 = inlined_call_operand.hbm [shape: f32[1,128], index: 0, kind: input, shape index: {}]
  %s1 = inlined_call_operand.vmem [shape: f32[1,128], index: 1, kind: input, shape index: {}]
  %s2 = inlined_call_operand.vmem [shape: f32[1,128], index: 2, kind: input, shape index: {}]
  %s3 = inlined_call_operand.hbm [shape: f32[3,128,128], index: 3, kind: input, shape index: {}]
  %s4 = inlined_call_operand.vmem [shape: f32[1,128], index: 4, kind: input, shape index: {}]
  %s5 = inlined_call_operand.hbm [shape: f32[64,128], index: 5, kind: input, shape index: {}]
  %s6 = inlined_call_operand.hbm [shape: f32[64,128], index: 6, kind: input, shape index: {}]
  %s7 = inlined_call_operand.hbm [shape: f32[64,128], index: 7, kind: input, shape index: {}]
  %s8 = inlined_call_operand.hbm [shape: f32[64,128], index: 8, kind: output, shape index: {0}]
  %s9 = inlined_call_operand.hbm [shape: f32[16,128], index: 9, kind: output, shape index: {1}]
  %10 = xla_tuple %s8, %s9
  %s11 = sld [smem:[#allocation0]]
  $region93: #{tpu_custom_call.1} parent=0
    _
  %s13 = ssub.s32 1, %s11
  %s14 = scalar_select 0, %s13, %s11
  $region1: #{tpu_custom_call.1} parent=0
    #allocation2 [shape = 'u8[512]{0}', space=vmem, size = 0x400, scoped, tag = 'input window, operand 0, single buffered']
    #allocation3 [shape = 's32[2]{0}', space=sflag, size = 0x8, scoped, tag = 'scoped memory for tpu_custom_call.1']
    #allocation4 [shape = 's32[2]{0}', space=sflag, size = 0x8, scoped, tag = 'scoped memory for tpu_custom_call.1']
    #allocation5 [shape = 'u8[196608]{0}', space=vmem, size = 0x30000, scoped, tag = 'input window, operand 3, single buffered']
    #allocation6 [shape = 's32[1]{0}', space=sflag, size = 0x4, scoped, tag = 'scoped memory for tpu_custom_call.1']
    #allocation7 [shape = 'u8[8192]{0}', space=vmem, size = 0x2000, scoped, tag = 'input window, operand 5']
    #allocation8 [shape = 'u8[32768]{0}', space=vmem, size = 0x8000, scoped, tag = 'input window, operand 6']
    #allocation9 [shape = 'u8[8192]{0}', space=vmem, size = 0x2000, scoped, tag = 'input window, operand 7']
    #allocation10 [shape = 'u8[32768]{0}', space=vmem, size = 0x8000, scoped, tag = 'output window, operand 0']
    #allocation11 [shape = 'u8[8192]{0}', space=vmem, size = 0x2000, scoped, tag = 'output window, operand 1']
    #allocation12 [shape = 's32[2]{0}', space=sflag, size = 0x8, scoped, tag = 'scoped memory for tpu_custom_call.1']
    %15 = vsyncpa [#allocation3], 0
    %16 = vsyncpa [#allocation6], 0
    %17 = vsyncpa [#allocation4], 0
    %s18 = scalar_lea.sflag [#allocation4], 1
    %19 = vsyncpa %s18, 0
    %20 = vsyncpa [#allocation12], 0
    %s21 = scalar_lea.sflag [#allocation12], 1
    %22 = vsyncpa %s21, 0
    loop: start=0, step=1, limit=4
    $region2: #{tpu_custom_call.1} parent=1 // loop_pre_header
      _
    $region3: #{tpu_custom_call.1} parent=1 // loop_header
      %s24 = sphi 0, %s28
      %p25 = scmp.ge.s32.totalorder %s24, 4
      %s32 = sphi 0, %s32
      %s34 = sphi 0, %s32
      %s35 = sphi 0, %s34
      %s49 = sphi 0, %s35
      %s53 = sphi 0, %s53
      %s55 = sphi 0, %s53
      %s56 = sphi 0, %s55
      %s70 = sphi 0, %s56
      %s74 = sphi 0, %s74
      %s76 = sphi 0, %s74
      %s77 = sphi 0, %s76
      %s91 = sphi 0, %s77
      %s95 = sphi 0, %s95
      %s97 = sphi 0, %s95
      %s98 = sphi 0, %s97
      %s112 = sphi 0, %s98
      %s116 = sphi 0, %s116
      %s118 = sphi 0, %s116
      %s119 = sphi 0, %s118
      %s133 = sphi 0, %s119
      %s147 = sphi 0, %s149
      %s150 = sphi 0, %s147
      %s151 = sphi 0, %s150
      %s167 = sphi 0, %s151
      %s173 = sphi 0, %s175
      %s176 = sphi 0, %s173
      %s177 = sphi 0, %s176
      %s193 = sphi 0, %s177
      %s207 = sphi 0, %s209
      %s210 = sphi 0, %s207
      %s211 = sphi 0, %s210
      %s227 = sphi 0, %s211
      %s233 = sphi 0, %s235
      %s236 = sphi 0, %s233
      %s237 = sphi 0, %s236
      %s253 = sphi 0, %s237
      %s259 = sphi 0, %s261
      %s262 = sphi 0, %s259
      %s263 = sphi 0, %s262
      %s279 = sphi 0, %s263
    $region4: #{tpu_custom_call.1} parent=1 // loop_header_branch
      %27 = sbr.rel (%p25) target = $region8
    $region5: #{tpu_custom_call.1} parent=1 // loop_body
      %s29 = ssub.s32 %s24, 1
      %s30 = ssub.s32 %s24, 2
      %s31 = sadd.s32 %s24, 1
      %s33 = sadd.s32 %s32, 1
      %p36 = scmp.eq.s32.totalorder %s24, 1
      %p37 = scmp.ne.s32.totalorder %s32, %s34
      %p38 = scmp.eq.s32.totalorder %s24, 0
      %p39 = por %p37, %p38
      %p40 = scmp.ne.s32.totalorder %s32, %s34
      %p41 = scmp.eq.s32.totalorder %s29, 1
      %p42 = por %p40, %p41
      %p43 = scmp.ne.s32.totalorder %s34, %s35
      %p44 = scmp.eq.s32.totalorder %s29, 0
      %p45 = por %p43, %p44
      %p46 = scmp.ne.s32.totalorder %s34, %s35
      %p47 = scmp.eq.s32.totalorder %s30, 1
      %p48 = por %p46, %p47
      %p50 = scmp.ne.s32.totalorder %s35, %s49
      %p51 = scmp.eq.s32.totalorder %s30, 0
      %p52 = por %p50, %p51
      %s54 = sadd.s32 %s53, 1
      %p57 = scmp.eq.s32.totalorder %s24, 1
      %p58 = scmp.ne.s32.totalorder %s53, %s55
      %p59 = scmp.eq.s32.totalorder %s24, 0
      %p60 = por %p58, %p59
      %p61 = scmp.ne.s32.totalorder %s53, %s55
      %p62 = scmp.eq.s32.totalorder %s29, 1
      %p63 = por %p61, %p62
      %p64 = scmp.ne.s32.totalorder %s55, %s56
      %p65 = scmp.eq.s32.totalorder %s29, 0
      %p66 = por %p64, %p65
      %p67 = scmp.ne.s32.totalorder %s55, %s56
      %p68 = scmp.eq.s32.totalorder %s30, 1
      %p69 = por %p67, %p68
      %p71 = scmp.ne.s32.totalorder %s56, %s70
      %p72 = scmp.eq.s32.totalorder %s30, 0
      %p73 = por %p71, %p72
      %s75 = sadd.s32 %s74, 1
      %p78 = scmp.eq.s32.totalorder %s24, 1
      %p79 = scmp.ne.s32.totalorder %s74, %s76
      %p80 = scmp.eq.s32.totalorder %s24, 0
      %p81 = por %p79, %p80
      %p82 = scmp.ne.s32.totalorder %s74, %s76
      %p83 = scmp.eq.s32.totalorder %s29, 1
      %p84 = por %p82, %p83
      %p85 = scmp.ne.s32.totalorder %s76, %s77
      %p86 = scmp.eq.s32.totalorder %s29, 0
      %p87 = por %p85, %p86
      %p88 = scmp.ne.s32.totalorder %s76, %s77
      %p89 = scmp.eq.s32.totalorder %s30, 1
      %p90 = por %p88, %p89
      %p92 = scmp.ne.s32.totalorder %s77, %s91
      %p93 = scmp.eq.s32.totalorder %s30, 0
      %p94 = por %p92, %p93
      %s96 = sadd.s32 %s95, 1
      %p99 = scmp.eq.s32.totalorder %s24, 1
      %p100 = scmp.ne.s32.totalorder %s95, %s97
      %p101 = scmp.eq.s32.totalorder %s24, 0
      %p102 = por %p100, %p101
      %p103 = scmp.ne.s32.totalorder %s95, %s97
      %p104 = scmp.eq.s32.totalorder %s29, 1
      %p105 = por %p103, %p104
      %p106 = scmp.ne.s32.totalorder %s97, %s98
      %p107 = scmp.eq.s32.totalorder %s29, 0
      %p108 = por %p106, %p107
      %p109 = scmp.ne.s32.totalorder %s97, %s98
      %p110 = scmp.eq.s32.totalorder %s30, 1
      %p111 = por %p109, %p110
      %p113 = scmp.ne.s32.totalorder %s98, %s112
      %p114 = scmp.eq.s32.totalorder %s30, 0
      %p115 = por %p113, %p114
      %s117 = sadd.s32 %s116, 1
      %p120 = scmp.eq.s32.totalorder %s24, 1
      %p121 = scmp.ne.s32.totalorder %s116, %s118
      %p122 = scmp.eq.s32.totalorder %s24, 0
      %p123 = por %p121, %p122
      %p124 = scmp.ne.s32.totalorder %s116, %s118
      %p125 = scmp.eq.s32.totalorder %s29, 1
      %p126 = por %p124, %p125
      %p127 = scmp.ne.s32.totalorder %s118, %s119
      %p128 = scmp.eq.s32.totalorder %s29, 0
      %p129 = por %p127, %p128
      %p130 = scmp.ne.s32.totalorder %s118, %s119
      %p131 = scmp.eq.s32.totalorder %s30, 1
      %p132 = por %p130, %p131
      %p134 = scmp.ne.s32.totalorder %s119, %s133
      %p135 = scmp.eq.s32.totalorder %s30, 0
      %p136 = por %p134, %p135
      %s137 = smul.u32 %s24, 4
      %s138 = ssub.s32 %s137, 1
      %p139 = scmp.gt.s32.totalorder %s138, 0
      %s140 = scalar_select %p139, %s138, 0
      %s141 = smul.u32 %s31, 4
      %s142 = ssub.s32 %s141, 1
      %p143 = scmp.gt.s32.totalorder %s142, 0
      %s144 = scalar_select %p143, %s142, 0
      %s145 = ssub.s32 %s140, %s144
      %p146 = scmp.eq.s32.totalorder %s145, 0
      %s148 = sadd.s32 %s147, 1
      %s149 = scalar_select %p146, %s147, %s148
      %p152 = pneg %p146
      %p153 = scmp.eq.s32.totalorder %s24, 1
      %p154 = por %p152, %p153
      %p155 = scmp.ne.s32.totalorder %s147, %s150
      %p156 = scmp.eq.s32.totalorder %s24, 0
      %p157 = por %p155, %p156
      %p158 = scmp.ne.s32.totalorder %s147, %s150
      %p159 = scmp.eq.s32.totalorder %s29, 1
      %p160 = por %p158, %p159
      %p161 = scmp.ne.s32.totalorder %s150, %s151
      %p162 = scmp.eq.s32.totalorder %s29, 0
      %p163 = por %p161, %p162
      %p164 = scmp.ne.s32.totalorder %s150, %s151
      %p165 = scmp.eq.s32.totalorder %s30, 1
      %p166 = por %p164, %p165
      %p168 = scmp.ne.s32.totalorder %s151, %s167
      %p169 = scmp.eq.s32.totalorder %s30, 0
      %p170 = por %p168, %p169
      %s171 = ssub.s32 %s24, %s31
      %p172 = scmp.eq.s32.totalorder %s171, 0
      %s174 = sadd.s32 %s173, 1
      %s175 = scalar_select %p172, %s173, %s174
      %p178 = pneg %p172
      %p179 = scmp.eq.s32.totalorder %s24, 1
      %p180 = por %p178, %p179
      %p181 = scmp.ne.s32.totalorder %s173, %s176
      %p182 = scmp.eq.s32.totalorder %s24, 0
      %p183 = por %p181, %p182
      %p184 = scmp.ne.s32.totalorder %s173, %s176
      %p185 = scmp.eq.s32.totalorder %s29, 1
      %p186 = por %p184, %p185
      %p187 = scmp.ne.s32.totalorder %s176, %s177
      %p188 = scmp.eq.s32.totalorder %s29, 0
      %p189 = por %p187, %p188
      %p190 = scmp.ne.s32.totalorder %s176, %s177
      %p191 = scmp.eq.s32.totalorder %s30, 1
      %p192 = por %p190, %p191
      %p194 = scmp.ne.s32.totalorder %s177, %s193
      %p195 = scmp.eq.s32.totalorder %s30, 0
      %p196 = por %p194, %p195
      %s197 = sadd.s32 %s24, 1
      %s198 = smul.u32 %s197, 4
      %p199 = scmp.lt.s32.totalorder %s198, 7
      %s200 = scalar_select %p199, %s198, 7
      %s201 = sadd.s32 %s31, 1
      %s202 = smul.u32 %s201, 4
      %p203 = scmp.lt.s32.totalorder %s202, 7
      %s204 = scalar_select %p203, %s202, 7
      %s205 = ssub.s32 %s200, %s204
      %p206 = scmp.eq.s32.totalorder %s205, 0
      %s208 = sadd.s32 %s207, 1
      %s209 = scalar_select %p206, %s207, %s208
      %p212 = pneg %p206
      %p213 = scmp.eq.s32.totalorder %s24, 1
      %p214 = por %p212, %p213
      %p215 = scmp.ne.s32.totalorder %s207, %s210
      %p216 = scmp.eq.s32.totalorder %s24, 0
      %p217 = por %p215, %p216
      %p218 = scmp.ne.s32.totalorder %s207, %s210
      %p219 = scmp.eq.s32.totalorder %s29, 1
      %p220 = por %p218, %p219
      %p221 = scmp.ne.s32.totalorder %s210, %s211
      %p222 = scmp.eq.s32.totalorder %s29, 0
      %p223 = por %p221, %p222
      %p224 = scmp.ne.s32.totalorder %s210, %s211
      %p225 = scmp.eq.s32.totalorder %s30, 1
      %p226 = por %p224, %p225
      %p228 = scmp.ne.s32.totalorder %s211, %s227
      %p229 = scmp.eq.s32.totalorder %s30, 0
      %p230 = por %p228, %p229
      %s231 = ssub.s32 %s24, %s31
      %p232 = scmp.eq.s32.totalorder %s231, 0
      %s234 = sadd.s32 %s233, 1
      %s235 = scalar_select %p232, %s233, %s234
      %p238 = pneg %p232
      %p239 = scmp.eq.s32.totalorder %s24, 1
      %p240 = por %p238, %p239
      %p241 = scmp.ne.s32.totalorder %s233, %s236
      %p242 = scmp.eq.s32.totalorder %s24, 0
      %p243 = por %p241, %p242
      %p244 = scmp.ne.s32.totalorder %s233, %s236
      %p245 = scmp.eq.s32.totalorder %s29, 1
      %p246 = por %p244, %p245
      %p247 = scmp.ne.s32.totalorder %s236, %s237
      %p248 = scmp.eq.s32.totalorder %s29, 0
      %p249 = por %p247, %p248
      %p250 = scmp.ne.s32.totalorder %s236, %s237
      %p251 = scmp.eq.s32.totalorder %s30, 1
      %p252 = por %p250, %p251
      %p254 = scmp.ne.s32.totalorder %s237, %s253
      %p255 = scmp.eq.s32.totalorder %s30, 0
      %p256 = por %p254, %p255
      %s257 = ssub.s32 %s24, %s31
      %p258 = scmp.eq.s32.totalorder %s257, 0
      %s260 = sadd.s32 %s259, 1
      %s261 = scalar_select %p258, %s259, %s260
      %p264 = pneg %p258
      %p265 = scmp.eq.s32.totalorder %s24, 1
      %p266 = por %p264, %p265
      %p267 = scmp.ne.s32.totalorder %s259, %s262
      %p268 = scmp.eq.s32.totalorder %s24, 0
      %p269 = por %p267, %p268
      %p270 = scmp.ne.s32.totalorder %s259, %s262
      %p271 = scmp.eq.s32.totalorder %s29, 1
      %p272 = por %p270, %p271
      %p273 = scmp.ne.s32.totalorder %s262, %s263
      %p274 = scmp.eq.s32.totalorder %s29, 0
      %p275 = por %p273, %p274
      %p276 = scmp.ne.s32.totalorder %s262, %s263
      %p277 = scmp.eq.s32.totalorder %s30, 1
      %p278 = por %p276, %p277
      %p280 = scmp.ne.s32.totalorder %s263, %s279
      %p281 = scmp.eq.s32.totalorder %s30, 0
      %p282 = por %p280, %p281
      %p283 = scmp.le.s32.totalorder 1, %s24
      %p284 = scmp.lt.s32.totalorder %s24, 3
      %p285 = pnand %p283, %p284
      %p286 = pneg %p285
      // Predicated region
      $region9: #{tpu_custom_call.1} parent=5 // pred_check
        _
      $region10: #{tpu_custom_call.1} parent=5 // pred_check_branch
        %288 = sbr.rel (%p285) target = $region12
      $region11: #{tpu_custom_call.1} parent=5 // pred_region
        %s289 = ssub.s32 %s24, 1
        // Predicated region
        $region13: #{tpu_custom_call.1} parent=11 // pred_check
          %p290 = pneg %p45
        $region14: #{tpu_custom_call.1} parent=11 // pred_check_branch
          %292 = sbr.rel (%p290) target = $region16
        $region15: #{tpu_custom_call.1} parent=11 // pred_region
          %s294 = ssub.s32 16, 16
          %295 = vsyncadd [#allocation3], %s294
          %s297 = sshll.u32 [#allocation2], 4
          %s298 = int_to_ptr.vmem [resolvable:$true] %s297
          %300 = dma.hbm_to_vmem [thread:$0]  %s0, 16, %s298, [#allocation3]
        $region16: #{tpu_custom_call.1} parent=11 // pred_fallthru
          _
        // Predicated region
        $region17: #{tpu_custom_call.1} parent=11 // pred_check
          %p301 = pneg %p66
        $region18: #{tpu_custom_call.1} parent=11 // pred_check_branch
          %303 = sbr.rel (%p301) target = $region20
        $region19: #{tpu_custom_call.1} parent=11 // pred_region
          _
        $region20: #{tpu_custom_call.1} parent=11 // pred_fallthru
          _
        // Predicated region
        $region21: #{tpu_custom_call.1} parent=11 // pred_check
          %p304 = pneg %p87
        $region22: #{tpu_custom_call.1} parent=11 // pred_check_branch
          %306 = sbr.rel (%p304) target = $region24
        $region23: #{tpu_custom_call.1} parent=11 // pred_region
          _
        $region24: #{tpu_custom_call.1} parent=11 // pred_fallthru
          _
        // Predicated region
        $region25: #{tpu_custom_call.1} parent=11 // pred_check
          %p307 = pneg %p108
        $region26: #{tpu_custom_call.1} parent=11 // pred_check_branch
          %309 = sbr.rel (%p307) target = $region28
        $region27: #{tpu_custom_call.1} parent=11 // pred_region
          %s311 = ssub.s32 6144, 6144
          %312 = vsyncadd [#allocation6], %s311
          %s313 = sshll.u32 [#allocation5], 4
          %s314 = int_to_ptr.vmem [resolvable:$true] %s313
          %319 = dma.hbm_to_vmem [thread:$0]  %s3, 6144, %s314, [#allocation6], 128, 128, 8
        $region28: #{tpu_custom_call.1} parent=11 // pred_fallthru
          _
        // Predicated region
        $region29: #{tpu_custom_call.1} parent=11 // pred_check
          %p320 = pneg %p129
        $region30: #{tpu_custom_call.1} parent=11 // pred_check_branch
          %322 = sbr.rel (%p320) target = $region32
        $region31: #{tpu_custom_call.1} parent=11 // pred_region
          _
        $region32: #{tpu_custom_call.1} parent=11 // pred_fallthru
          _
      $region12: #{tpu_custom_call.1} parent=5 // pred_fallthru
        _
      %p323 = scmp.lt.s32.totalorder %s24, 2
      // Predicated region
      $region33: #{tpu_custom_call.1} parent=5 // pred_check
        %p324 = pneg %p323
      $region34: #{tpu_custom_call.1} parent=5 // pred_check_branch
        %326 = sbr.rel (%p324) target = $region36
      $region35: #{tpu_custom_call.1} parent=5 // pred_region
        // Predicated region
        $region37: #{tpu_custom_call.1} parent=35 // pred_check
          %p327 = pneg %p157
        $region38: #{tpu_custom_call.1} parent=35 // pred_check_branch
          %329 = sbr.rel (%p327) target = $region40
        $region39: #{tpu_custom_call.1} parent=35 // pred_region
          %s330 = sand.u32 %s24, 1
          %s331 = scalar_lea.sflag [#allocation3], %s330
          %s332 = sand.u32 %s147, 1
          %s333 = smul.addr %s332, 8
          %s334 = scalar_lea.vmem [#allocation7], %s333
          %s335 = smul.u32 %s24, 4
          %s336 = ssub.s32 %s335, 1
          %p337 = scmp.gt.s32.totalorder %s336, 0
          %s338 = scalar_select %p337, %s336, 0
          %s340 = ssub.s32 128, 128
          %341 = vsyncadd %s331, %s340
          %s342 = smul.addr %s338, 128
          %s343 = scalar_lea.hbm %s5, %s342
          %s345 = sshll.u32 %s334, 4
          %s346 = int_to_ptr.vmem [resolvable:$true] %s345
          %348 = dma.hbm_to_vmem [thread:$0]  %s343, 128, %s346, %s331
        $region40: #{tpu_custom_call.1} parent=35 // pred_fallthru
          _
        // Predicated region
        $region41: #{tpu_custom_call.1} parent=35 // pred_check
          %p349 = pneg %p183
        $region42: #{tpu_custom_call.1} parent=35 // pred_check_branch
          %351 = sbr.rel (%p349) target = $region44
        $region43: #{tpu_custom_call.1} parent=35 // pred_region
          %s352 = sand.u32 %s24, 1
          %s353 = scalar_lea.sflag [#allocation3], %s352
          %s354 = sand.u32 %s173, 1
          %s355 = smul.addr %s354, 32
          %s356 = scalar_lea.vmem [#allocation8], %s355
          %s357 = smul.u32 4, %s24
          %s359 = ssub.s32 512, 512
          %360 = vsyncadd %s353, %s359
          %s361 = smul.addr %s357, 128
          %s362 = scalar_lea.hbm %s6, %s361
          %s363 = sshll.u32 %s356, 4
          %s364 = int_to_ptr.vmem [resolvable:$true] %s363
          %369 = dma.hbm_to_vmem [thread:$0]  %s362, 512, %s364, %s353, 128, 128, 8
        $region44: #{tpu_custom_call.1} parent=35 // pred_fallthru
          _
        // Predicated region
        $region45: #{tpu_custom_call.1} parent=35 // pred_check
          %p370 = pneg %p217
        $region46: #{tpu_custom_call.1} parent=35 // pred_check_branch
          %372 = sbr.rel (%p370) target = $region48
        $region47: #{tpu_custom_call.1} parent=35 // pred_region
          %s373 = sand.u32 %s24, 1
          %s374 = scalar_lea.sflag [#allocation3], %s373
          %s375 = sand.u32 %s207, 1
          %s376 = smul.addr %s375, 8
          %s377 = scalar_lea.vmem [#allocation9], %s376
          %s378 = sadd.s32 %s24, 1
          %s379 = smul.u32 %s378, 4
          %p380 = scmp.lt.s32.totalorder %s379, 7
          %s381 = scalar_select %p380, %s379, 7
          %s383 = ssub.s32 128, 128
          %384 = vsyncadd %s374, %s383
          %s385 = smul.addr %s381, 128
          %s386 = scalar_lea.hbm %s7, %s385
          %s388 = sshll.u32 %s377, 4
          %s389 = int_to_ptr.vmem [resolvable:$true] %s388
          %391 = dma.hbm_to_vmem [thread:$0]  %s386, 128, %s389, %s374
        $region48: #{tpu_custom_call.1} parent=35 // pred_fallthru
          _
      $region36: #{tpu_custom_call.1} parent=5 // pred_fallthru
        _
      %p392 = scmp.le.s32.totalorder 1, %s24
      %p393 = scmp.lt.s32.totalorder %s24, 3
      %p394 = pnand %p392, %p393
      %p395 = pneg %p394
      // Predicated region
      $region49: #{tpu_custom_call.1} parent=5 // pred_check
        _
      $region50: #{tpu_custom_call.1} parent=5 // pred_check_branch
        %397 = sbr.rel (%p394) target = $region52
      $region51: #{tpu_custom_call.1} parent=5 // pred_region
        %s398 = ssub.s32 %s24, 1
        // Predicated region
        $region53: #{tpu_custom_call.1} parent=51 // pred_check
          %p399 = pneg %p45
        $region54: #{tpu_custom_call.1} parent=51 // pred_check_branch
          %401 = sbr.rel (%p399) target = $region56
        $region55: #{tpu_custom_call.1} parent=51 // pred_region
          %402 = dma.done [#allocation3], 16
        $region56: #{tpu_custom_call.1} parent=51 // pred_fallthru
          _
        // Predicated region
        $region57: #{tpu_custom_call.1} parent=51 // pred_check
          %p403 = pneg %p108
        $region58: #{tpu_custom_call.1} parent=51 // pred_check_branch
          %405 = sbr.rel (%p403) target = $region60
        $region59: #{tpu_custom_call.1} parent=51 // pred_region
          %406 = dma.done [#allocation6], 6144
        $region60: #{tpu_custom_call.1} parent=51 // pred_fallthru
          _
        %s407 = sand.u32 %s29, 1
        %s408 = scalar_lea.sflag [#allocation3], %s407
        %s409 = sand.u32 %s150, 1
        %s410 = smul.addr %s409, 8
        %s411 = scalar_lea.vmem [#allocation7], %s410
        // Predicated region
        $region61: #{tpu_custom_call.1} parent=51 // pred_check
          %p412 = pneg %p163
        $region62: #{tpu_custom_call.1} parent=51 // pred_check_branch
          %414 = sbr.rel (%p412) target = $region64
        $region63: #{tpu_custom_call.1} parent=51 // pred_region
          %415 = dma.done %s408, 128
        $region64: #{tpu_custom_call.1} parent=51 // pred_fallthru
          _
        %s416 = sand.u32 %s29, 1
        %s417 = scalar_lea.sflag [#allocation3], %s416
        %s418 = sand.u32 %s176, 1
        %s419 = smul.addr %s418, 32
        %s420 = scalar_lea.vmem [#allocation8], %s419
        // Predicated region
        $region65: #{tpu_custom_call.1} parent=51 // pred_check
          %p421 = pneg %p189
        $region66: #{tpu_custom_call.1} parent=51 // pred_check_branch
          %423 = sbr.rel (%p421) target = $region68
        $region67: #{tpu_custom_call.1} parent=51 // pred_region
          %424 = dma.done %s417, 512
        $region68: #{tpu_custom_call.1} parent=51 // pred_fallthru
          _
        %s425 = sand.u32 %s29, 1
        %s426 = scalar_lea.sflag [#allocation3], %s425
        %s427 = sand.u32 %s210, 1
        %s428 = smul.addr %s427, 8
        %s429 = scalar_lea.vmem [#allocation9], %s428
        // Predicated region
        $region69: #{tpu_custom_call.1} parent=51 // pred_check
          %p430 = pneg %p223
        $region70: #{tpu_custom_call.1} parent=51 // pred_check_branch
          %432 = sbr.rel (%p430) target = $region72
        $region71: #{tpu_custom_call.1} parent=51 // pred_region
          %433 = dma.done %s426, 128
        $region72: #{tpu_custom_call.1} parent=51 // pred_fallthru
          _
        %p434 = pneg %p45
        %p435 = pneg %p42
        %p436 = pneg %p66
        %p437 = pneg %p63
        %p438 = pneg %p87
        %p439 = pneg %p84
        %p440 = pneg %p108
        %p441 = pneg %p105
        %p442 = pneg %p129
        %p443 = pneg %p126
        %s444 = sand.u32 %s29, 1
        %s445 = scalar_lea.sflag [#allocation3], %s444
        %s446 = sand.u32 %s150, 1
        %s447 = smul.addr %s446, 8
        %s448 = scalar_lea.vmem [#allocation7], %s447
        %p449 = pneg %p163
        %p450 = pneg %p160
        %s451 = sand.u32 %s29, 1
        %s452 = scalar_lea.sflag [#allocation3], %s451
        %s453 = sand.u32 %s176, 1
        %s454 = smul.addr %s453, 32
        %s455 = scalar_lea.vmem [#allocation8], %s454
        %p456 = pneg %p189
        %p457 = pneg %p186
        %s458 = sand.u32 %s29, 1
        %s459 = scalar_lea.sflag [#allocation3], %s458
        %s460 = sand.u32 %s210, 1
        %s461 = smul.addr %s460, 8
        %s462 = scalar_lea.vmem [#allocation9], %s461
        %p463 = pneg %p223
        %p464 = pneg %p220
        %p465 = pneg %p249
        %p466 = pneg %p246
        %s467 = sand.u32 %s236, 1
        %s468 = scalar_lea.sflag [#allocation4], %s467
        %s469 = sand.u32 %s236, 1
        %s470 = smul.addr %s469, 32
        %s471 = scalar_lea.vmem [#allocation10], %s470
        %p472 = pneg %p275
        %p473 = pneg %p272
        %s474 = sand.u32 %s262, 1
        %s475 = scalar_lea.sflag [#allocation12], %s474
        %s476 = sand.u32 %s262, 1
        %s477 = smul.addr %s476, 8
        %s478 = scalar_lea.vmem [#allocation11], %s477
        %s479 = smul.u32 %s29, 4
        %s480 = ssub.s32 %s479, 1
        %p481 = scmp.gt.s32.totalorder %s480, 0
        %s482 = scalar_select %p481, %s480, 0
        %s483 = smul.u32 4, %s29
        %s484 = sadd.s32 %s29, 1
        %s485 = smul.u32 %s484, 4
        %p486 = scmp.lt.s32.totalorder %s485, 7
        %s487 = scalar_select %p486, %s485, 7
        %s488 = smul.u32 4, %s29
        %s489 = smul.u32 %s29, 32
        %v490 = vld [vmem:[#allocation2] sm:$0x1]
        %v491 = vld [vmem:[%s1] sm:$0x1]
        %v492 = vld [vmem:[%s2] sm:$0x1]
        %v493 = vlaneseq
        %v494 = vshrl.u32 %v493, 7
        %v495 = vadd.s32 %v494, 8
        %v496 = vadd.s32 %v494, 16
        %v497 = vadd.s32 %v494, 24
        %v498 = vstv %s489
        %v499 = vadd.s32 %v498, %v494
        %v500 = vadd.s32 %v498, %v495
        %v501 = vadd.s32 %v498, %v496
        %v502 = vadd.s32 %v498, %v497
        %v503 = vcvt.s32.f32 %v499
        %v504 = vcvt.s32.f32 %v500
        %v505 = vcvt.s32.f32 %v501
        %v506 = vcvt.s32.f32 %v502
        %v507 = vrcp.pop 18.0
        %v508 = vmul.f32 %v503, %v507
        %v509 = vmul.f32 %v504, %v507
        %v510 = vmul.f32 %v505, %v507
        %v511 = vmul.f32 %v506, %v507
        %v512 = vfloor.f32 %v508
        %v513 = vfloor.f32 %v509
        %v514 = vfloor.f32 %v510
        %v515 = vfloor.f32 %v511
        %v516 = vmul.f32 %v512, 18.0
        %v517 = vmul.f32 %v513, 18.0
        %v518 = vmul.f32 %v514, 18.0
        %v519 = vmul.f32 %v515, 18.0
        %v520 = vsub.f32 %v503, %v516
        %v521 = vsub.f32 %v504, %v517
        %v522 = vsub.f32 %v505, %v518
        %v523 = vsub.f32 %v506, %v519
        %vm524 = vcmp.ge.f32.partialorder %v520, 1.0
        %vm525 = vcmp.ge.f32.partialorder %v521, 1.0
        %vm526 = vcmp.ge.f32.partialorder %v522, 1.0
        %vm527 = vcmp.ge.f32.partialorder %v523, 1.0
        %vm528 = vcmp.le.f32.partialorder %v520, 16.0
        %vm529 = vcmp.le.f32.partialorder %v521, 16.0
        %vm530 = vcmp.le.f32.partialorder %v522, 16.0
        %vm531 = vcmp.le.f32.partialorder %v523, 16.0
        %vm532 = vmand %vm524, %vm528
        %vm533 = vmand %vm525, %vm529
        %vm534 = vmand %vm526, %vm530
        %vm535 = vmand %vm527, %vm531
        %vm536 = vcmp.lt.f32.partialorder %v503, 36.0
        %vm537 = vcmp.lt.f32.partialorder %v504, 36.0
        %vm538 = vcmp.lt.f32.partialorder %v505, 36.0
        %vm539 = vcmp.lt.f32.partialorder %v506, 36.0
        %vm540 = vmand %vm532, %vm536
        %vm541 = vmand %vm533, %vm537
        %vm542 = vmand %vm534, %vm538
        %vm543 = vmand %vm535, %vm539
        %v544 = vsel %vm540, 1.0, 0.0
        %v545 = vsel %vm541, 1.0, 0.0
        %v546 = vsel %vm542, 1.0, 0.0
        %v547 = vsel %vm543, 1.0, 0.0
        %v548 = vld [vmem:[%s420] sm:$0xff]
        %v549 = vld [vmem:[%s420 + $0x8] sm:$0xff]
        %v550 = vld [vmem:[%s420 + $0x10] sm:$0xff]
        %v551 = vld [vmem:[%s420 + $0x18] sm:$0xff]
        %v553 = vlaneseq
        %v554 = vshrl.u32 %v553, 7
        %v555 = vsub.s32 0, %v554
        %v556 = vrot.slane %v490, %v555
        %v558 = vmul.f32 %v548, %v556
        %v559 = vmul.f32 %v549, %v556
        %v560 = vmul.f32 %v550, %v556
        %v561 = vmul.f32 %v551, %v556
        %v563 = vlaneseq
        %v564 = vshrl.u32 %v563, 7
        %v565 = vsub.s32 0, %v564
        %v566 = vrot.slane %v491, %v565
        %v568 = vadd.f32 %v558, %v566
        %v569 = vadd.f32 %v559, %v566
        %v570 = vadd.f32 %v560, %v566
        %v571 = vadd.f32 %v561, %v566
        %v572 = vmax.f32 %v568, 0.0
        %v573 = vmax.f32 %v569, 0.0
        %v574 = vmax.f32 %v570, 0.0
        %v575 = vmax.f32 %v571, 0.0
        %v576 = vmin.f32 %v568, 0.0
        %v577 = vmin.f32 %v569, 0.0
        %v578 = vmin.f32 %v570, 0.0
        %v579 = vmin.f32 %v571, 0.0
        %v581 = vlaneseq
        %v582 = vshrl.u32 %v581, 7
        %v583 = vsub.s32 0, %v582
        %v584 = vrot.slane %v492, %v583
        %v586 = vmul.f32 %v584, %v576
        %v587 = vmul.f32 %v584, %v577
        %v588 = vmul.f32 %v584, %v578
        %v589 = vmul.f32 %v584, %v579
        %v590 = vadd.f32 %v572, %v586
        %v591 = vadd.f32 %v573, %v587
        %v592 = vadd.f32 %v574, %v588
        %v593 = vadd.f32 %v575, %v589
        %v594 = vmul.f32 %v590, %v544
        %v595 = vmul.f32 %v591, %v545
        %v596 = vmul.f32 %v592, %v546
        %v597 = vmul.f32 %v593, %v547
        %v598 = vld [vmem:[%s411] sm:$0xff]
        %s599 = ssub.s32 %s489, 8
        %p600 = scmp.gt.s32.totalorder %s599, 0
        %s601 = scalar_select %p600, %s599, 0
        %v602 = vstv %s601
        %v603 = vadd.s32 %v602, %v494
        %v604 = vcvt.s32.f32 %v603
        %v605 = vmul.f32 %v604, %v507
        %v606 = vfloor.f32 %v605
        %v607 = vmul.f32 %v606, 18.0
        %v608 = vsub.f32 %v604, %v607
        %vm609 = vcmp.ge.f32.partialorder %v608, 1.0
        %vm610 = vcmp.le.f32.partialorder %v608, 16.0
        %vm611 = vmand %vm609, %vm610
        %vm612 = vcmp.lt.f32.partialorder %v604, 36.0
        %vm613 = vmand %vm611, %vm612
        %v614 = vsel %vm613, 1.0, 0.0
        %v615 = vmul.f32 %v598, %v556
        %v616 = vadd.f32 %v615, %v566
        %v617 = vmax.f32 %v616, 0.0
        %v618 = vmin.f32 %v616, 0.0
        %v619 = vmul.f32 %v584, %v618
        %v620 = vadd.f32 %v617, %v619
        %v621 = vmul.f32 %v620, %v614
        %v622 = vld [vmem:[%s429] sm:$0xff]
        %s623 = sadd.s32 %s489, 32
        %p624 = scmp.lt.s32.totalorder %s623, 56
        %s625 = scalar_select %p624, %s623, 56
        %v626 = vstv %s625
        %v627 = vadd.s32 %v626, %v494
        %v628 = vcvt.s32.f32 %v627
        %v629 = vmul.f32 %v628, %v507
        %v630 = vfloor.f32 %v629
        %v631 = vmul.f32 %v630, 18.0
        %v632 = vsub.f32 %v628, %v631
        %vm633 = vcmp.ge.f32.partialorder %v632, 1.0
        %vm634 = vcmp.le.f32.partialorder %v632, 16.0
        %vm635 = vmand %vm633, %vm634
        %vm636 = vcmp.lt.f32.partialorder %v628, 36.0
        %vm637 = vmand %vm635, %vm636
        %v638 = vsel %vm637, 1.0, 0.0
        %v639 = vmul.f32 %v622, %v556
        %v640 = vadd.f32 %v639, %v566
        %v641 = vmax.f32 %v640, 0.0
        %v642 = vmin.f32 %v640, 0.0
        %v643 = vmul.f32 %v584, %v642
        %v644 = vadd.f32 %v641, %v643
        %v645 = vmul.f32 %v644, %v638
        %v647 = vrot.slane %v621, 7
        %vm653 = vcmask 1040384
        %v654 = vrot.slane %v594, 7
        %v655 = vrot.slane %v595, 7
        %v656 = vsel %vm653, %v654, %v655
        %v657 = vrot.slane %v596, 7
        %v658 = vsel %vm653, %v655, %v657
        %v659 = vrot.slane %v597, 7
        %v660 = vsel %vm653, %v657, %v659
        %v665 = vsel %vm653, %v647, %v654
        %vm666 = vcmask 1046528
        %v667 = vrot.slane %v594, 1
        %v668 = vrot.slane %v595, 1
        %v669 = vsel %vm666, %v667, %v668
        %v670 = vrot.slane %v596, 1
        %v671 = vsel %vm666, %v668, %v670
        %v672 = vrot.slane %v597, 1
        %v673 = vsel %vm666, %v670, %v672
        %v679 = vrot.slane %v645, 1
        %v681 = vsel %vm666, %v672, %v679
        %v682 = vld [vmem:[#allocation5] sm:$0xff]
        %v683 = vld [vmem:[#allocation5 + $0x8] sm:$0xff]
        %v684 = vld [vmem:[#allocation5 + $0x10] sm:$0xff]
        %v685 = vld [vmem:[#allocation5 + $0x18] sm:$0xff]
        %v686 = vld [vmem:[#allocation5 + $0x20] sm:$0xff]
        %v687 = vld [vmem:[#allocation5 + $0x28] sm:$0xff]
        %v688 = vld [vmem:[#allocation5 + $0x30] sm:$0xff]
        %v689 = vld [vmem:[#allocation5 + $0x38] sm:$0xff]
        %v690 = vld [vmem:[#allocation5 + $0x40] sm:$0xff]
        %v691 = vld [vmem:[#allocation5 + $0x48] sm:$0xff]
        %v692 = vld [vmem:[#allocation5 + $0x50] sm:$0xff]
        %v693 = vld [vmem:[#allocation5 + $0x58] sm:$0xff]
        %v694 = vld [vmem:[#allocation5 + $0x60] sm:$0xff]
        %v695 = vld [vmem:[#allocation5 + $0x68] sm:$0xff]
        %v696 = vld [vmem:[#allocation5 + $0x70] sm:$0xff]
        %v697 = vld [vmem:[#allocation5 + $0x78] sm:$0xff]
        %s698 = scalar_lea.vmem [#allocation5], 128
        %v699 = vld [vmem:[%s698] sm:$0xff]
        %v700 = vld [vmem:[%s698 + $0x8] sm:$0xff]
        %v701 = vld [vmem:[%s698 + $0x10] sm:$0xff]
        %v702 = vld [vmem:[%s698 + $0x18] sm:$0xff]
        %v703 = vld [vmem:[%s698 + $0x20] sm:$0xff]
        %v704 = vld [vmem:[%s698 + $0x28] sm:$0xff]
        %v705 = vld [vmem:[%s698 + $0x30] sm:$0xff]
        %v706 = vld [vmem:[%s698 + $0x38] sm:$0xff]
        %v707 = vld [vmem:[%s698 + $0x40] sm:$0xff]
        %v708 = vld [vmem:[%s698 + $0x48] sm:$0xff]
        %v709 = vld [vmem:[%s698 + $0x50] sm:$0xff]
        %v710 = vld [vmem:[%s698 + $0x58] sm:$0xff]
        %v711 = vld [vmem:[%s698 + $0x60] sm:$0xff]
        %v712 = vld [vmem:[%s698 + $0x68] sm:$0xff]
        %v713 = vld [vmem:[%s698 + $0x70] sm:$0xff]
        %v714 = vld [vmem:[%s698 + $0x78] sm:$0xff]
        %715 = vmatprep.subr.mxu0 0.0
        %716 = vmatpush1.msra.mxu0 %v714
        %717 = vmatprep.subr.mxu0 0.0
        %718 = vmatpush1.msra.mxu0 %v713
        %719 = vmatprep.subr.mxu0 0.0
        %720 = vmatpush1.msra.mxu0 %v712
        %721 = vmatprep.subr.mxu0 0.0
        %722 = vmatpush1.msra.mxu0 %v711
        %723 = vmatprep.subr.mxu0 0.0
        %724 = vmatpush1.msra.mxu0 %v710
        %725 = vmatprep.subr.mxu0 0.0
        %726 = vmatpush1.msra.mxu0 %v709
        %727 = vmatprep.subr.mxu0 0.0
        %728 = vmatpush1.msra.mxu0 %v708
        %729 = vmatprep.subr.mxu0 0.0
        %730 = vmatpush1.msra.mxu0 %v707
        %731 = vmatprep.subr.mxu0 0.0
        %732 = vmatpush1.msra.mxu0 %v706
        %733 = vmatprep.subr.mxu0 0.0
        %734 = vmatpush1.msra.mxu0 %v705
        %735 = vmatprep.subr.mxu0 0.0
        %736 = vmatpush1.msra.mxu0 %v704
        %737 = vmatprep.subr.mxu0 0.0
        %738 = vmatpush1.msra.mxu0 %v703
        %739 = vmatprep.subr.mxu0 0.0
        %740 = vmatpush1.msra.mxu0 %v702
        %741 = vmatprep.subr.mxu0 0.0
        %742 = vmatpush1.msra.mxu0 %v701
        %743 = vmatprep.subr.mxu0 0.0
        %744 = vmatpush1.msra.mxu0 %v700
        %745 = vmatprep.subr.mxu0 0.0
        %746 = vmatpush1.msra.mxu0 %v699
        %747 = vmatprep.subr.mxu0 0.0
        %748 = vmatpush2.msra.mxu0 0.0
        %749 = vmatprep.subr.mxu0 0.0
        %750 = vmatpush2.msra.mxu0 0.0
        %751 = vmatprep.subr.mxu0 0.0
        %752 = vmatpush2.msra.mxu0 0.0
        %753 = vmatprep.subr.mxu0 0.0
        %754 = vmatpush2.msra.mxu0 0.0
        %755 = vmatprep.subr.mxu0 0.0
        %756 = vmatpush2.msra.mxu0 0.0
        %757 = vmatprep.subr.mxu0 0.0
        %758 = vmatpush2.msra.mxu0 0.0
        %759 = vmatprep.subr.mxu0 0.0
        %760 = vmatpush2.msra.mxu0 0.0
        %761 = vmatprep.subr.mxu0 0.0
        %762 = vmatpush2.msra.mxu0 0.0
        %763 = vmatprep.subr.mxu0 0.0
        %764 = vmatpush2.msra.mxu0 0.0
        %765 = vmatprep.subr.mxu0 0.0
        %766 = vmatpush2.msra.mxu0 0.0
        %767 = vmatprep.subr.mxu0 0.0
        %768 = vmatpush2.msra.mxu0 0.0
        %769 = vmatprep.subr.mxu0 0.0
        %770 = vmatpush2.msra.mxu0 0.0
        %771 = vmatprep.subr.mxu0 0.0
        %772 = vmatpush2.msra.mxu0 0.0
        %773 = vmatprep.subr.mxu0 0.0
        %774 = vmatpush2.msra.mxu0 0.0
        %775 = vmatprep.subr.mxu0 0.0
        %776 = vmatpush2.msra.mxu0 0.0
        %777 = vmatprep.subr.mxu0 0.0
        %778 = vmatpush2.msra.mxu0 0.0
        %779 = vmatprep.mubr.f32.mxu0 0.0
        %780 = vmatmul.mubr.f32.gmra.mxu0 %v594
        %v781 = vpop.f32.mrf.mxu0
        %v782 = vadd.f32 0.0, %v781
        %v783 = vpop.f32.mrf.mxu0
        %784 = vmatprep.mubr.f32.mxu0 0.0
        %785 = vmatmul.mubr.f32.gmra.mxu0 %v595
        %v786 = vpop.f32.mrf.mxu0
        %v787 = vadd.f32 0.0, %v786
        %v788 = vpop.f32.mrf.mxu0
        %789 = vmatprep.mubr.f32.mxu0 0.0
        %790 = vmatmul.mubr.f32.gmra.mxu0 %v596
        %v791 = vpop.f32.mrf.mxu0
        %v792 = vadd.f32 0.0, %v791
        %v793 = vpop.f32.mrf.mxu0
        %794 = vmatprep.mubr.f32.mxu0 0.0
        %795 = vmatmul.mubr.f32.gmra.mxu0 %v597
        %v796 = vpop.f32.mrf.mxu0
        %v797 = vadd.f32 0.0, %v796
        %v798 = vpop.f32.mrf.mxu0
        %799 = vdwg.mxu0
        %800 = vmatprep.subr.mxu0 0.0
        %801 = vmatpush1.msra.mxu0 %v697
        %802 = vmatprep.subr.mxu0 0.0
        %803 = vmatpush1.msra.mxu0 %v696
        %804 = vmatprep.subr.mxu0 0.0
        %805 = vmatpush1.msra.mxu0 %v695
        %806 = vmatprep.subr.mxu0 0.0
        %807 = vmatpush1.msra.mxu0 %v694
        %808 = vmatprep.subr.mxu0 0.0
        %809 = vmatpush1.msra.mxu0 %v693
        %810 = vmatprep.subr.mxu0 0.0
        %811 = vmatpush1.msra.mxu0 %v692
        %812 = vmatprep.subr.mxu0 0.0
        %813 = vmatpush1.msra.mxu0 %v691
        %814 = vmatprep.subr.mxu0 0.0
        %815 = vmatpush1.msra.mxu0 %v690
        %816 = vmatprep.subr.mxu0 0.0
        %817 = vmatpush1.msra.mxu0 %v689
        %818 = vmatprep.subr.mxu0 0.0
        %819 = vmatpush1.msra.mxu0 %v688
        %820 = vmatprep.subr.mxu0 0.0
        %821 = vmatpush1.msra.mxu0 %v687
        %822 = vmatprep.subr.mxu0 0.0
        %823 = vmatpush1.msra.mxu0 %v686
        %824 = vmatprep.subr.mxu0 0.0
        %825 = vmatpush1.msra.mxu0 %v685
        %826 = vmatprep.subr.mxu0 0.0
        %827 = vmatpush1.msra.mxu0 %v684
        %828 = vmatprep.subr.mxu0 0.0
        %829 = vmatpush1.msra.mxu0 %v683
        %830 = vmatprep.subr.mxu0 0.0
        %831 = vmatpush1.msra.mxu0 %v682
        %832 = vmatprep.subr.mxu0 0.0
        %833 = vmatpush2.msra.mxu0 0.0
        %834 = vmatprep.subr.mxu0 0.0
        %835 = vmatpush2.msra.mxu0 0.0
        %836 = vmatprep.subr.mxu0 0.0
        %837 = vmatpush2.msra.mxu0 0.0
        %838 = vmatprep.subr.mxu0 0.0
        %839 = vmatpush2.msra.mxu0 0.0
        %840 = vmatprep.subr.mxu0 0.0
        %841 = vmatpush2.msra.mxu0 0.0
        %842 = vmatprep.subr.mxu0 0.0
        %843 = vmatpush2.msra.mxu0 0.0
        %844 = vmatprep.subr.mxu0 0.0
        %845 = vmatpush2.msra.mxu0 0.0
        %846 = vmatprep.subr.mxu0 0.0
        %847 = vmatpush2.msra.mxu0 0.0
        %848 = vmatprep.subr.mxu0 0.0
        %849 = vmatpush2.msra.mxu0 0.0
        %850 = vmatprep.subr.mxu0 0.0
        %851 = vmatpush2.msra.mxu0 0.0
        %852 = vmatprep.subr.mxu0 0.0
        %853 = vmatpush2.msra.mxu0 0.0
        %854 = vmatprep.subr.mxu0 0.0
        %855 = vmatpush2.msra.mxu0 0.0
        %856 = vmatprep.subr.mxu0 0.0
        %857 = vmatpush2.msra.mxu0 0.0
        %858 = vmatprep.subr.mxu0 0.0
        %859 = vmatpush2.msra.mxu0 0.0
        %860 = vmatprep.subr.mxu0 0.0
        %861 = vmatpush2.msra.mxu0 0.0
        %862 = vmatprep.subr.mxu0 0.0
        %863 = vmatpush2.msra.mxu0 0.0
        %864 = vmatprep.mubr.f32.mxu0 0.0
        %865 = vmatmul.mubr.f32.gmra.mxu0 %v665
        %v866 = vpop.f32.mrf.mxu0
        %v867 = vadd.f32 %v782, %v866
        %v868 = vpop.f32.mrf.mxu0
        %869 = vmatprep.mubr.f32.mxu0 0.0
        %870 = vmatmul.mubr.f32.gmra.mxu0 %v656
        %v871 = vpop.f32.mrf.mxu0
        %v872 = vadd.f32 %v787, %v871
        %v873 = vpop.f32.mrf.mxu0
        %874 = vmatprep.mubr.f32.mxu0 0.0
        %875 = vmatmul.mubr.f32.gmra.mxu0 %v658
        %v876 = vpop.f32.mrf.mxu0
        %v877 = vadd.f32 %v792, %v876
        %v878 = vpop.f32.mrf.mxu0
        %879 = vmatprep.mubr.f32.mxu0 0.0
        %880 = vmatmul.mubr.f32.gmra.mxu0 %v660
        %v881 = vpop.f32.mrf.mxu0
        %v882 = vadd.f32 %v797, %v881
        %v883 = vpop.f32.mrf.mxu0
        %884 = vdwg.mxu0
        %s885 = scalar_lea.vmem [#allocation5], 256
        %v886 = vld [vmem:[%s885] sm:$0xff]
        %v887 = vld [vmem:[%s885 + $0x8] sm:$0xff]
        %v888 = vld [vmem:[%s885 + $0x10] sm:$0xff]
        %v889 = vld [vmem:[%s885 + $0x18] sm:$0xff]
        %v890 = vld [vmem:[%s885 + $0x20] sm:$0xff]
        %v891 = vld [vmem:[%s885 + $0x28] sm:$0xff]
        %v892 = vld [vmem:[%s885 + $0x30] sm:$0xff]
        %v893 = vld [vmem:[%s885 + $0x38] sm:$0xff]
        %v894 = vld [vmem:[%s885 + $0x40] sm:$0xff]
        %v895 = vld [vmem:[%s885 + $0x48] sm:$0xff]
        %v896 = vld [vmem:[%s885 + $0x50] sm:$0xff]
        %v897 = vld [vmem:[%s885 + $0x58] sm:$0xff]
        %v898 = vld [vmem:[%s885 + $0x60] sm:$0xff]
        %v899 = vld [vmem:[%s885 + $0x68] sm:$0xff]
        %v900 = vld [vmem:[%s885 + $0x70] sm:$0xff]
        %v901 = vld [vmem:[%s885 + $0x78] sm:$0xff]
        %902 = vmatprep.subr.mxu0 0.0
        %903 = vmatpush1.msra.mxu0 %v901
        %904 = vmatprep.subr.mxu0 0.0
        %905 = vmatpush1.msra.mxu0 %v900
        %906 = vmatprep.subr.mxu0 0.0
        %907 = vmatpush1.msra.mxu0 %v899
        %908 = vmatprep.subr.mxu0 0.0
        %909 = vmatpush1.msra.mxu0 %v898
        %910 = vmatprep.subr.mxu0 0.0
        %911 = vmatpush1.msra.mxu0 %v897
        %912 = vmatprep.subr.mxu0 0.0
        %913 = vmatpush1.msra.mxu0 %v896
        %914 = vmatprep.subr.mxu0 0.0
        %915 = vmatpush1.msra.mxu0 %v895
        %916 = vmatprep.subr.mxu0 0.0
        %917 = vmatpush1.msra.mxu0 %v894
        %918 = vmatprep.subr.mxu0 0.0
        %919 = vmatpush1.msra.mxu0 %v893
        %920 = vmatprep.subr.mxu0 0.0
        %921 = vmatpush1.msra.mxu0 %v892
        %922 = vmatprep.subr.mxu0 0.0
        %923 = vmatpush1.msra.mxu0 %v891
        %924 = vmatprep.subr.mxu0 0.0
        %925 = vmatpush1.msra.mxu0 %v890
        %926 = vmatprep.subr.mxu0 0.0
        %927 = vmatpush1.msra.mxu0 %v889
        %928 = vmatprep.subr.mxu0 0.0
        %929 = vmatpush1.msra.mxu0 %v888
        %930 = vmatprep.subr.mxu0 0.0
        %931 = vmatpush1.msra.mxu0 %v887
        %932 = vmatprep.subr.mxu0 0.0
        %933 = vmatpush1.msra.mxu0 %v886
        %934 = vmatprep.subr.mxu0 0.0
        %935 = vmatpush2.msra.mxu0 0.0
        %936 = vmatprep.subr.mxu0 0.0
        %937 = vmatpush2.msra.mxu0 0.0
        %938 = vmatprep.subr.mxu0 0.0
        %939 = vmatpush2.msra.mxu0 0.0
        %940 = vmatprep.subr.mxu0 0.0
        %941 = vmatpush2.msra.mxu0 0.0
        %942 = vmatprep.subr.mxu0 0.0
        %943 = vmatpush2.msra.mxu0 0.0
        %944 = vmatprep.subr.mxu0 0.0
        %945 = vmatpush2.msra.mxu0 0.0
        %946 = vmatprep.subr.mxu0 0.0
        %947 = vmatpush2.msra.mxu0 0.0
        %948 = vmatprep.subr.mxu0 0.0
        %949 = vmatpush2.msra.mxu0 0.0
        %950 = vmatprep.subr.mxu0 0.0
        %951 = vmatpush2.msra.mxu0 0.0
        %952 = vmatprep.subr.mxu0 0.0
        %953 = vmatpush2.msra.mxu0 0.0
        %954 = vmatprep.subr.mxu0 0.0
        %955 = vmatpush2.msra.mxu0 0.0
        %956 = vmatprep.subr.mxu0 0.0
        %957 = vmatpush2.msra.mxu0 0.0
        %958 = vmatprep.subr.mxu0 0.0
        %959 = vmatpush2.msra.mxu0 0.0
        %960 = vmatprep.subr.mxu0 0.0
        %961 = vmatpush2.msra.mxu0 0.0
        %962 = vmatprep.subr.mxu0 0.0
        %963 = vmatpush2.msra.mxu0 0.0
        %964 = vmatprep.subr.mxu0 0.0
        %965 = vmatpush2.msra.mxu0 0.0
        %966 = vmatprep.mubr.f32.mxu0 0.0
        %967 = vmatmul.mubr.f32.gmra.mxu0 %v669
        %v968 = vpop.f32.mrf.mxu0
        %v969 = vadd.f32 0.0, %v968
        %v970 = vpop.f32.mrf.mxu0
        %971 = vmatprep.mubr.f32.mxu0 0.0
        %972 = vmatmul.mubr.f32.gmra.mxu0 %v671
        %v973 = vpop.f32.mrf.mxu0
        %v974 = vadd.f32 0.0, %v973
        %v975 = vpop.f32.mrf.mxu0
        %976 = vmatprep.mubr.f32.mxu0 0.0
        %977 = vmatmul.mubr.f32.gmra.mxu0 %v673
        %v978 = vpop.f32.mrf.mxu0
        %v979 = vadd.f32 0.0, %v978
        %v980 = vpop.f32.mrf.mxu0
        %981 = vmatprep.mubr.f32.mxu0 0.0
        %982 = vmatmul.mubr.f32.gmra.mxu0 %v681
        %v983 = vpop.f32.mrf.mxu0
        %v984 = vadd.f32 0.0, %v983
        %v985 = vpop.f32.mrf.mxu0
        %986 = vdwg.mxu0
        %v987 = vadd.f32 %v867, %v969
        %v988 = vadd.f32 %v872, %v974
        %v989 = vadd.f32 %v877, %v979
        %v990 = vadd.f32 %v882, %v984
        %v991 = vld [vmem:[%s4] sm:$0x1]
        %v993 = vlaneseq
        %v994 = vshrl.u32 %v993, 7
        %v995 = vsub.s32 0, %v994
        %v996 = vrot.slane %v991, %v995
        %v998 = vadd.f32 %v987, %v996
        %v999 = vadd.f32 %v988, %v996
        %v1000 = vadd.f32 %v989, %v996
        %v1001 = vadd.f32 %v990, %v996
        %v1002 = vmul.f32 %v998, %v544
        %v1003 = vmul.f32 %v999, %v545
        %v1004 = vmul.f32 %v1000, %v546
        %v1005 = vmul.f32 %v1001, %v547
        %1006 = vst [vmem:[%s471] sm:$0xff] %v1002
        %1007 = vst [vmem:[%s471 + $0x8] sm:$0xff] %v1003
        %1008 = vst [vmem:[%s471 + $0x10] sm:$0xff] %v1004
        %1009 = vst [vmem:[%s471 + $0x18] sm:$0xff] %v1005
        %v1010 = vadd.f32 %v1002, %v1003
        %v1011 = vadd.f32 %v1010, %v1004
        %v1012 = vadd.f32 %v1011, %v1005
        %v1013 = vrot.slane %v1012, 4
        %v1014 = vadd.f32 %v1012, %v1013
        %v1015 = vrot.slane %v1014, 2
        %v1016 = vadd.f32 %v1014, %v1015
        %v1017 = vrot.slane %v1016, 1
        %v1018 = vadd.f32 %v1016, %v1017
        %v1019 = vmul.f32 %v1002, %v1002
        %v1020 = vmul.f32 %v1003, %v1003
        %v1021 = vmul.f32 %v1004, %v1004
        %v1022 = vmul.f32 %v1005, %v1005
        %v1023 = vadd.f32 %v1019, %v1020
        %v1024 = vadd.f32 %v1023, %v1021
        %v1025 = vadd.f32 %v1024, %v1022
        %v1026 = vrot.slane %v1025, 4
        %v1027 = vadd.f32 %v1025, %v1026
        %v1028 = vrot.slane %v1027, 2
        %v1029 = vadd.f32 %v1027, %v1028
        %v1030 = vrot.slane %v1029, 1
        %v1031 = vadd.f32 %v1029, %v1030
        %v1032 = vsel %vm653, %v1018, %v1031
        %vm1033 = vcmask 1041408
        %v1034 = vsel %vm1033, %v1032, 0.0
        %1035 = vst [vmem:[%s478] sm:$0xff] %v1034
        %s1036 = sand.u32 %s236, 1
        %s1037 = scalar_lea.sflag [#allocation4], %s1036
        %s1038 = sand.u32 %s236, 1
        %s1039 = smul.addr %s1038, 32
        %s1040 = scalar_lea.vmem [#allocation10], %s1039
        %s1041 = sand.u32 %s262, 1
        %s1042 = scalar_lea.sflag [#allocation12], %s1041
        %s1043 = sand.u32 %s262, 1
        %s1044 = smul.addr %s1043, 8
        %s1045 = scalar_lea.vmem [#allocation11], %s1044
        // Predicated region
        $region73: #{tpu_custom_call.1} parent=51 // pred_check
          %p1046 = pneg %p246
        $region74: #{tpu_custom_call.1} parent=51 // pred_check_branch
          %1048 = sbr.rel (%p1046) target = $region76
        $region75: #{tpu_custom_call.1} parent=51 // pred_region
          %s1049 = smul.u32 4, %s29
          %s1051 = ssub.s32 512, 512
          %1052 = vsyncadd %s1037, %s1051
          %s1053 = smul.addr %s1049, 128
          %s1054 = scalar_lea.hbm %s8, %s1053
          %s1055 = sshll.u32 %s1040, 4
          %s1056 = int_to_ptr.vmem [resolvable:$true] %s1055
          %1061 = dma.vmem_to_hbm [thread:$0]  %s1056, 512, %s1054, %s1037, 128, 128, 8
        $region76: #{tpu_custom_call.1} parent=51 // pred_fallthru
          _
        // Predicated region
        $region77: #{tpu_custom_call.1} parent=51 // pred_check
          %p1062 = pneg %p272
        $region78: #{tpu_custom_call.1} parent=51 // pred_check_branch
          %1064 = sbr.rel (%p1062) target = $region80
        $region79: #{tpu_custom_call.1} parent=51 // pred_region
          %s1066 = ssub.s32 128, 128
          %1067 = vsyncadd %s1042, %s1066
          %s1068 = smul.addr %s29, 128
          %s1069 = scalar_lea.hbm %s9, %s1068
          %s1071 = sshll.u32 %s1045, 4
          %s1072 = int_to_ptr.vmem [resolvable:$true] %s1071
          %1074 = dma.vmem_to_hbm [thread:$0]  %s1072, 128, %s1069, %s1042
        $region80: #{tpu_custom_call.1} parent=51 // pred_fallthru
          _
      $region52: #{tpu_custom_call.1} parent=5 // pred_fallthru
        _
      %p1075 = scmp.le.s32.totalorder 2, %s24
      // Predicated region
      $region81: #{tpu_custom_call.1} parent=5 // pred_check
        %p1076 = pneg %p1075
      $region82: #{tpu_custom_call.1} parent=5 // pred_check_branch
        %1078 = sbr.rel (%p1076) target = $region84
      $region83: #{tpu_custom_call.1} parent=5 // pred_region
        %s1079 = ssub.s32 %s24, 2
        // Predicated region
        $region85: #{tpu_custom_call.1} parent=83 // pred_check
          %p1080 = pneg %p252
        $region86: #{tpu_custom_call.1} parent=83 // pred_check_branch
          %1082 = sbr.rel (%p1080) target = $region88
        $region87: #{tpu_custom_call.1} parent=83 // pred_region
          %s1083 = sand.u32 %s237, 1
          %s1084 = scalar_lea.sflag [#allocation4], %s1083
          %s1085 = sand.u32 %s237, 1
          %s1086 = smul.addr %s1085, 32
          %s1087 = scalar_lea.vmem [#allocation10], %s1086
          %1088 = dma.done %s1084, 512
        $region88: #{tpu_custom_call.1} parent=83 // pred_fallthru
          _
        // Predicated region
        $region89: #{tpu_custom_call.1} parent=83 // pred_check
          %p1089 = pneg %p278
        $region90: #{tpu_custom_call.1} parent=83 // pred_check_branch
          %1091 = sbr.rel (%p1089) target = $region92
        $region91: #{tpu_custom_call.1} parent=83 // pred_region
          %s1092 = sand.u32 %s263, 1
          %s1093 = scalar_lea.sflag [#allocation12], %s1092
          %s1094 = sand.u32 %s263, 1
          %s1095 = smul.addr %s1094, 8
          %s1096 = scalar_lea.vmem [#allocation11], %s1095
          %1097 = dma.done %s1093, 128
        $region92: #{tpu_custom_call.1} parent=83 // pred_fallthru
          _
      $region84: #{tpu_custom_call.1} parent=5 // pred_fallthru
        _
    $region6: #{tpu_custom_call.1} parent=1 // loop_footer
      %s28 = sadd.s32 1, %s24
    $region7: #{tpu_custom_call.1} parent=1 // loop_footer_branch
      %23 = sbr.rel target = $region3
    $region8: #{tpu_custom_call.1} parent=1 // loop_exit
      _
    %1098 = vsyncpa [#allocation3], 1
    %s1099 = scalar_lea.sflag [#allocation3], 1
    %1100 = vsyncpa %s1099, 1
    %1101 = vsyncpa [#allocation6], 1
    %1102 = vsyncpa [#allocation4], 1
    %s1103 = scalar_lea.sflag [#allocation4], 1
    %1104 = vsyncpa %s1103, 1
    %1105 = vsyncpa [#allocation12], 1
    %s1106 = scalar_lea.sflag [#allocation12], 1
    %1107 = vsyncpa %s1106, 1

</llo_original>
